<compile_context>
chip_gen: v6e
topology: v6e:2x2x1
jax: 0.10.0
libtpu: 0.0.40
codegen_flags: <defaults>
</compile_context>

<pallas_src>
import jax
import jax.numpy as jnp
from jax.experimental import pallas as pl
from jax.experimental.pallas import tpu as pltpu

LN_EPS = 1e-5  # torch.nn.LayerNorm default


def _ldm_fused_kernel(x_ref, we_ref, be_ref, wd_ref, bd_ref, o_ref):
    """Fused encoder-matmul -> LayerNorm(no affine) -> decoder-matmul on one NCW tile.

    x_ref : (1, C_in, TILE_T)   NCW tile (time on the 128-lane axis), stream dtype
    we_ref: (Z, C_in)           encoder pointwise-conv weight (transposed), stream dtype
    be_ref: (Z, 1)              encoder bias, f32
    wd_ref: (C_out, Z)          decoder pointwise-conv weight (transposed), stream dtype
    bd_ref: (C_out, 1)          decoder bias, f32
    o_ref : (1, C_out, TILE_T)  stream dtype
    """
    x = x_ref[0]  # (C_in, TILE_T) in the native streamed dtype

    # encoder: pointwise conv == channel matmul, f32 accumulation on the MXU
    h = jnp.dot(we_ref[...], x, preferred_element_type=jnp.float32) + be_ref[...]

    # normalize_latents: LayerNorm over z_channels (axis 0 here), elementwise_affine=False.
    # Two-pass variance (matches torch; avoids E[x^2]-mu^2 cancellation), rsqrt on the EUP.
    inv_z = 1.0 / h.shape[0]
    mu = jnp.sum(h, axis=0, keepdims=True) * inv_z
    d = h - mu
    var = jnp.sum(d * d, axis=0, keepdims=True) * inv_z
    hn = d * jax.lax.rsqrt(var + LN_EPS)

    # decoder: pointwise conv == channel matmul; operands in the stream dtype (bf16-friendly),
    # accumulation in f32.
    out = jnp.dot(wd_ref[...], hn.astype(wd_ref.dtype),
                  preferred_element_type=jnp.float32) + bd_ref[...]
    o_ref[0] = out.astype(o_ref.dtype)


def _choose_tile_t(T, B, max_tile_t, min_steps=8):
    """Largest time tile that (a) is a multiple of 128, (b) divides T exactly (no pad/slice),
    (c) keeps >= min_steps grid steps when possible (so v7x's 2 TCs each pipeline several)."""
    if T % 128 != 0:
        # Full-extent block is always legal for the lane dim; grid has a single time step.
        # TODO(synk): for very large non-128-aligned T, fall back to an in-kernel tail mask.
        return T
    cands = [c for c in range(128, min(max_tile_t, T) + 1, 128) if T % c == 0]
    if not cands:
        return T
    best = cands[0]
    for c in cands:  # ascending; keep the largest tile that still gives enough steps
        if B * (T // c) >= min_steps:
            best = c
    if B * (T // cands[0]) < min_steps:  # tiny input: just minimize step count
        best = cands[-1]
    return best


def ldm_base_audio_forward(x_ncw, w_enc, b_enc, w_dec, b_dec, *, max_tile_t=4096):
    """x_ncw: (B, C_in, T) PyTorch NCW layout.
    w_enc: (C_in, Z), b_enc: (Z,); w_dec: (Z, C_out), b_dec: (C_out,).
    Returns (z_dec (B, C_out, T), ret dict)."""
    B, C_in, T = x_ncw.shape
    Z = w_enc.shape[1]
    C_out = w_dec.shape[1]
    dtype = x_ncw.dtype

    tile_t = _choose_tile_t(T, B, max_tile_t)
    grid = (B, T // tile_t)

    # Tiny one-off weight reshapes (negligible next to the streamed activations).
    we_t = jnp.transpose(w_enc).astype(dtype)                  # (Z, C_in)
    be = jnp.reshape(b_enc, (Z, 1)).astype(jnp.float32)        # (Z, 1)
    wd_t = jnp.transpose(w_dec).astype(dtype)                  # (C_out, Z)
    bd = jnp.reshape(b_dec, (C_out, 1)).astype(jnp.float32)    # (C_out, 1)

    # Explicit scoped-VMEM budget (v5e defaults to 16 MiB): double-buffered in/out blocks,
    # f32 h/d/hn temporaries, tiny weights -- with 4x headroom, clamped to [8, 32] MiB.
    itemsize = jnp.dtype(dtype).itemsize
    est = (2 * C_in * tile_t * itemsize          # double-buffered input block
           + 2 * C_out * tile_t * itemsize       # double-buffered output block
           + 4 * Z * tile_t * 4                  # f32 temporaries (h, d, hn, slack)
           + (Z * C_in + C_out * Z + Z + C_out) * 4 + 4096)
    vmem_limit = int(min(max(4 * est, 8 << 20), 32 << 20))

    out = pl.pallas_call(
        _ldm_fused_kernel,
        out_shape=jax.ShapeDtypeStruct((B, C_out, T), dtype),
        grid_spec=pltpu.PrefetchScalarGridSpec(
            num_scalar_prefetch=0,
            grid=grid,
            in_specs=[
                pl.BlockSpec((1, C_in, tile_t), lambda b, t: (b, 0, t)),
                pl.BlockSpec((Z, C_in), lambda b, t: (0, 0)),
                pl.BlockSpec((Z, 1), lambda b, t: (0, 0)),
                pl.BlockSpec((C_out, Z), lambda b, t: (0, 0)),
                pl.BlockSpec((C_out, 1), lambda b, t: (0, 0)),
            ],
            out_specs=pl.BlockSpec((1, C_out, tile_t), lambda b, t: (b, 0, t)),
        ),
        compiler_params=pltpu.CompilerParams(
            dimension_semantics=("parallel", "parallel"),
            vmem_limit_bytes=vmem_limit,
        ),
    )(x_ncw, we_t, be, wd_t, bd)

    ret = {"loss": jnp.float32(0.0)}
    return out, ret


def _reference_forward(x_ncw, w_enc, b_enc, w_dec, b_dec):
    """Pure-JAX f32 reference mirroring the PyTorch semantics."""
    x = jnp.transpose(x_ncw, (0, 2, 1)).astype(jnp.float32)      # (B, T, C_in)
    h = x @ w_enc.astype(jnp.float32) + jnp.reshape(b_enc, (1, 1, -1)).astype(jnp.float32)
    mu = jnp.mean(h, axis=-1, keepdims=True)
    var = jnp.mean((h - mu) ** 2, axis=-1, keepdims=True)
    hn = (h - mu) / jnp.sqrt(var + LN_EPS)                       # LayerNorm, no affine
    out = hn @ w_dec.astype(jnp.float32) + jnp.reshape(b_dec, (1, 1, -1)).astype(jnp.float32)
    return jnp.transpose(out, (0, 2, 1))                         # NCW, f32


if __name__ == "__main__":
    # Small shapes consistent with an audio LDM: (B, C_in, T) latent-audio input.
    # T chosen so the chosen tile (2048) yields 8 grid steps (>= 4 per v7x TensorCore).
    B, C_in, T = 2, 16, 8192
    Z_CHANNELS = 32   # z_channels (LayerNorm dim)
    C_OUT = 16        # decoder output channels

    key = jax.random.PRNGKey(0)
    kx, kwe, kbe, kwd, kbd = jax.random.split(key, 5)

    x = jax.random.normal(kx, (B, C_in, T), dtype=jnp.float32)

    # Deterministic synthetic parameters (pointwise-conv weights as matrices).
    w_enc = jax.random.normal(kwe, (C_in, Z_CHANNELS), dtype=jnp.float32) * 0.1
    b_enc = jax.random.normal(kbe, (Z_CHANNELS,), dtype=jnp.float32) * 0.01
    w_dec = jax.random.normal(kwd, (Z_CHANNELS, C_OUT), dtype=jnp.float32) * 0.1
    b_dec = jax.random.normal(kbd, (C_OUT,), dtype=jnp.float32) * 0.01

    z_ref = jax.block_until_ready(_reference_forward(x, w_enc, b_enc, w_dec, b_dec))

    # f32 path: tight check against the reference.
    z_dec, ret = ldm_base_audio_forward(x, w_enc, b_enc, w_dec, b_dec)
    z_dec = jax.block_until_ready(z_dec)
    assert z_dec.shape == (B, C_OUT, T)
    assert jnp.allclose(z_dec.astype(jnp.float32), z_ref, atol=1e-4, rtol=1e-4), "f32 mismatch vs reference"
    assert float(ret["loss"]) == 0.0

    # bf16 streaming path (halves HBM traffic): loose sanity check vs the f32 reference.
    z_dec_bf, _ = ldm_base_audio_forward(
        x.astype(jnp.bfloat16), w_enc, b_enc, w_dec, b_dec)
    z_dec_bf = jax.block_until_ready(z_dec_bf)
    max_err = float(jnp.max(jnp.abs(z_dec_bf.astype(jnp.float32) - z_ref)))
    assert max_err < 0.25, f"bf16 path diverged from reference: max abs err {max_err}"

    print("KERNEL_OK")
</pallas_src>

<mosaic_0001>
module attributes {stable_mosaic.version = 11 : i64} {
  func.func @_ldm_fused_kernel(%arg0: i32, %arg1: i32, %arg2: memref<1x16x2048xf32, #tpu.memory_space<vmem>>, %arg3: memref<32x16xf32, #tpu.memory_space<vmem>>, %arg4: memref<32x1xf32, #tpu.memory_space<vmem>>, %arg5: memref<16x32xf32, #tpu.memory_space<vmem>>, %arg6: memref<16x1xf32, #tpu.memory_space<vmem>>, %arg7: memref<1x16x2048xf32, #tpu.memory_space<vmem>>) attributes {dimension_semantics = [#tpu.dimension_semantics<parallel>, #tpu.dimension_semantics<parallel>], iteration_bounds = array<i64: 2, 4>, scalar_prefetch = 0 : i64, scratch_operands = 0 : i64, tpu.core_type = #tpu.core_type<tc>, window_params = [{transform_indices = @transform_0, window_bounds = array<i64: 1, 16, 2048>}, {pipeline_mode = #tpu.pipeline_mode<synchronous>, transform_indices = @transform_1, window_bounds = array<i64: 32, 16>}, {pipeline_mode = #tpu.pipeline_mode<synchronous>, transform_indices = @transform_2, window_bounds = array<i64: 32, 1>}, {pipeline_mode = #tpu.pipeline_mode<synchronous>, transform_indices = @transform_3, window_bounds = array<i64: 16, 32>}, {pipeline_mode = #tpu.pipeline_mode<synchronous>, transform_indices = @transform_4, window_bounds = array<i64: 16, 1>}, {transform_indices = @transform_5, window_bounds = array<i64: 1, 16, 2048>}]} {
    %c0 = arith.constant 0 : index
    %c0_0 = arith.constant 0 : index
    %c0_1 = arith.constant 0 : index
    %0 = vector.load %arg2[%c0, %c0_0, %c0_1] : memref<1x16x2048xf32, #tpu.memory_space<vmem>>, vector<1x16x2048xf32>
    %1 = vector.shape_cast %0 : vector<1x16x2048xf32> to vector<16x2048xf32>
    %c0_2 = arith.constant 0 : index
    %c0_3 = arith.constant 0 : index
    %2 = vector.load %arg3[%c0_2, %c0_3] : memref<32x16xf32, #tpu.memory_space<vmem>>, vector<32x16xf32>
    %cst = arith.constant dense<0.000000e+00> : vector<32x2048xf32>
    %3 = tpu.matmul %2, %1, %cst {dimension_numbers = #tpu.dot_dimension_numbers<[1], [0], [0], [1], [0, 0, 1, 1], [], []>} : vector<32x16xf32>, vector<16x2048xf32>, vector<32x2048xf32> -> vector<32x2048xf32>
    %c0_4 = arith.constant 0 : index
    %c0_5 = arith.constant 0 : index
    %4 = vector.load %arg4[%c0_4, %c0_5] : memref<32x1xf32, #tpu.memory_space<vmem>>, vector<32x1xf32>
    %5 = vector.broadcast %4 : vector<32x1xf32> to vector<32x2048xf32>
    %6 = arith.addf %3, %5 : vector<32x2048xf32>
    %cst_6 = arith.constant dense<0.000000e+00> : vector<2048xf32>
    %7 = vector.multi_reduction <add>, %6, %cst_6 [0] : vector<32x2048xf32> to vector<2048xf32>
    %8 = vector.shape_cast %7 : vector<2048xf32> to vector<1x2048xf32>
    %cst_7 = arith.constant 3.125000e-02 : f32
    %9 = vector.broadcast %cst_7 : f32 to vector<1x2048xf32>
    %10 = arith.mulf %8, %9 : vector<1x2048xf32>
    %11 = vector.broadcast %10 : vector<1x2048xf32> to vector<32x2048xf32>
    %12 = arith.subf %6, %11 : vector<32x2048xf32>
    %13 = arith.mulf %12, %12 : vector<32x2048xf32>
    %cst_8 = arith.constant dense<0.000000e+00> : vector<2048xf32>
    %14 = vector.multi_reduction <add>, %13, %cst_8 [0] : vector<32x2048xf32> to vector<2048xf32>
    %15 = vector.shape_cast %14 : vector<2048xf32> to vector<1x2048xf32>
    %cst_9 = arith.constant 3.125000e-02 : f32
    %16 = vector.broadcast %cst_9 : f32 to vector<1x2048xf32>
    %17 = arith.mulf %15, %16 : vector<1x2048xf32>
    %cst_10 = arith.constant 9.99999974E-6 : f32
    %18 = vector.broadcast %cst_10 : f32 to vector<1x2048xf32>
    %19 = arith.addf %17, %18 : vector<1x2048xf32>
    %20 = math.rsqrt %19 : vector<1x2048xf32>
    %21 = vector.broadcast %20 : vector<1x2048xf32> to vector<32x2048xf32>
    %22 = arith.mulf %12, %21 : vector<32x2048xf32>
    %c0_11 = arith.constant 0 : index
    %c0_12 = arith.constant 0 : index
    %23 = vector.load %arg5[%c0_11, %c0_12] : memref<16x32xf32, #tpu.memory_space<vmem>>, vector<16x32xf32>
    %cst_13 = arith.constant dense<0.000000e+00> : vector<16x2048xf32>
    %24 = tpu.matmul %23, %22, %cst_13 {dimension_numbers = #tpu.dot_dimension_numbers<[1], [0], [0], [1], [0, 0, 1, 1], [], []>} : vector<16x32xf32>, vector<32x2048xf32>, vector<16x2048xf32> -> vector<16x2048xf32>
    %c0_14 = arith.constant 0 : index
    %c0_15 = arith.constant 0 : index
    %25 = vector.load %arg6[%c0_14, %c0_15] : memref<16x1xf32, #tpu.memory_space<vmem>>, vector<16x1xf32>
    %26 = vector.broadcast %25 : vector<16x1xf32> to vector<16x2048xf32>
    %27 = arith.addf %24, %26 : vector<16x2048xf32>
    %c0_16 = arith.constant 0 : index
    %c0_17 = arith.constant 0 : index
    %c0_18 = arith.constant 0 : index
    %28 = vector.load %arg7[%c0_16, %c0_17, %c0_18] : memref<1x16x2048xf32, #tpu.memory_space<vmem>>, vector<1x16x2048xf32>
    %29 = vector.shape_cast %28 : vector<1x16x2048xf32> to vector<16x2048xf32>
    %30 = vector.shape_cast %27 : vector<16x2048xf32> to vector<1x16x2048xf32>
    tpu.vector_store %arg7[%c0_16, %c0_17, %c0_18], %30 {strides = array<i32>} : memref<1x16x2048xf32, #tpu.memory_space<vmem>>, vector<1x16x2048xf32>,
    return
  }
  func.func @transform_0(%arg0: i32, %arg1: i32) -> (i32, i32, i32) {
    %c0_i32 = arith.constant 0 : i32
    %c0_i32_0 = arith.constant 0 : i32
    return %arg0, %c0_i32, %arg1 : i32, i32, i32
  }
  func.func @transform_1(%arg0: i32, %arg1: i32) -> (i32, i32) {
    %c0_i32 = arith.constant 0 : i32
    %c0_i32_0 = arith.constant 0 : i32
    %c0_i32_1 = arith.constant 0 : i32
    return %c0_i32, %c0_i32_0 : i32, i32
  }
  func.func @transform_2(%arg0: i32, %arg1: i32) -> (i32, i32) {
    %c0_i32 = arith.constant 0 : i32
    %c0_i32_0 = arith.constant 0 : i32
    %c0_i32_1 = arith.constant 0 : i32
    return %c0_i32, %c0_i32_0 : i32, i32
  }
  func.func @transform_3(%arg0: i32, %arg1: i32) -> (i32, i32) {
    %c0_i32 = arith.constant 0 : i32
    %c0_i32_0 = arith.constant 0 : i32
    %c0_i32_1 = arith.constant 0 : i32
    return %c0_i32, %c0_i32_0 : i32, i32
  }
  func.func @transform_4(%arg0: i32, %arg1: i32) -> (i32, i32) {
    %c0_i32 = arith.constant 0 : i32
    %c0_i32_0 = arith.constant 0 : i32
    %c0_i32_1 = arith.constant 0 : i32
    return %c0_i32, %c0_i32_0 : i32, i32
  }
  func.func @transform_5(%arg0: i32, %arg1: i32) -> (i32, i32, i32) {
    %c0_i32 = arith.constant 0 : i32
    %c0_i32_0 = arith.constant 0 : i32
    return %arg0, %c0_i32, %arg1 : i32, i32, i32
  }
}

</mosaic_0001>

<llo_original>
// kernel: tpu_custom_call.1
$region0: #{tpu_custom_call.1}
  #allocation0 [shape = 'u32[]', space=smem, size = 0x4, offset = 0x4, fixed_abs, tag = 'smem constant byte address 0x4 - core index']
  #allocation1 [shape = 'u32[144,128]{1,0:T(1,128)}', space=vmem, size = 0x12000, scoped, tag = 'internal scratch']
  %s0 = inlined_call_operand.hbm [shape: f32[2,16,8192], index: 0, kind: input, shape index: {}]
  %s1 = inlined_call_operand.vmem [shape: f32[32,16], index: 1, kind: input, shape index: {}]
  %s2 = inlined_call_operand.vmem [shape: f32[32,1], index: 2, kind: input, shape index: {}]
  %s3 = inlined_call_operand.vmem [shape: f32[16,32], index: 3, kind: input, shape index: {}]
  %s4 = inlined_call_operand.vmem [shape: f32[16,1], index: 4, kind: input, shape index: {}]
  %s5 = inlined_call_operand.hbm [shape: f32[2,16,8192], index: 5, kind: output, shape index: {}]
  %s6 = sld [smem:[#allocation0]]
  $region57: #{tpu_custom_call.1} parent=0
    _
  %s8 = ssub.s32 1, %s6
  %s9 = scalar_select 0, %s8, %s6
  $region1: #{tpu_custom_call.1} parent=0
    #allocation2 [shape = 'u8[262144]{0}', space=vmem, size = 0x40000, scoped, tag = 'input window, operand 0']
    #allocation3 [shape = 's32[2]{0}', space=sflag, size = 0x8, scoped, tag = 'scoped memory for tpu_custom_call.1']
    #allocation4 [shape = 's32[2]{0}', space=sflag, size = 0x8, scoped, tag = 'scoped memory for tpu_custom_call.1']
    #allocation5 [shape = 'u8[262144]{0}', space=vmem, size = 0x40000, scoped, tag = 'output window, operand 0']
    %10 = vsyncpa [#allocation3], 0
    %s11 = scalar_lea.sflag [#allocation3], 1
    %12 = vsyncpa %s11, 0
    %13 = vsyncpa [#allocation4], 0
    %s14 = scalar_lea.sflag [#allocation4], 1
    %15 = vsyncpa %s14, 0
    loop: start=0, step=1, limit=10
    $region2: #{tpu_custom_call.1} parent=1 // loop_pre_header
      _
    $region3: #{tpu_custom_call.1} parent=1 // loop_header
      %s17 = sphi 0, %s21
      %p18 = scmp.ge.s32.totalorder %s17, 10
      %s24 = sphi 0, %s36
      %s25 = sphi 0, %s32
      %s26 = sphi 0, %s24
      %s27 = sphi 0, %s25
      %s28 = sphi 0, %s26
      %s29 = sphi 0, %s27
      %s41 = sphi 0, %s43
      %s44 = sphi 0, %s41
      %s45 = sphi 0, %s44
      %s61 = sphi 0, %s45
      %s65 = sphi 0, %s65
      %s67 = sphi 0, %s65
      %s68 = sphi 0, %s67
      %s82 = sphi 0, %s68
      %s86 = sphi 0, %s86
      %s88 = sphi 0, %s86
      %s89 = sphi 0, %s88
      %s103 = sphi 0, %s89
      %s107 = sphi 0, %s107
      %s109 = sphi 0, %s107
      %s110 = sphi 0, %s109
      %s124 = sphi 0, %s110
      %s128 = sphi 0, %s128
      %s130 = sphi 0, %s128
      %s131 = sphi 0, %s130
      %s145 = sphi 0, %s131
      %s153 = sphi 0, %s155
      %s156 = sphi 0, %s153
      %s157 = sphi 0, %s156
      %s173 = sphi 0, %s157
    $region4: #{tpu_custom_call.1} parent=1 // loop_header_branch
      %20 = sbr.rel (%p18) target = $region8
    $region5: #{tpu_custom_call.1} parent=1 // loop_body
      %s22 = ssub.s32 %s17, 1
      %s23 = ssub.s32 %s17, 2
      %s30 = sadd.s32 1, %s25
      %p31 = scmp.ge.s32.totalorder %s30, 4
      %s32 = scalar_select %p31, 0, %s30
      %s33 = sadd.s32 1, %s24
      %s34 = scalar_select %p31, %s33, %s24
      %p35 = scmp.ge.s32.totalorder %s34, 2
      %s36 = scalar_select %p35, 0, %s34
      %s37 = ssub.s32 %s24, %s36
      %s38 = ssub.s32 %s25, %s32
      %s39 = sor.u32 %s37, %s38
      %p40 = scmp.eq.s32.totalorder %s39, 0
      %s42 = sadd.s32 %s41, 1
      %s43 = scalar_select %p40, %s41, %s42
      %p46 = pneg %p40
      %p47 = scmp.eq.s32.totalorder %s17, 7
      %p48 = por %p46, %p47
      %p49 = scmp.ne.s32.totalorder %s41, %s44
      %p50 = scmp.eq.s32.totalorder %s17, 0
      %p51 = por %p49, %p50
      %p52 = scmp.ne.s32.totalorder %s41, %s44
      %p53 = scmp.eq.s32.totalorder %s22, 7
      %p54 = por %p52, %p53
      %p55 = scmp.ne.s32.totalorder %s44, %s45
      %p56 = scmp.eq.s32.totalorder %s22, 0
      %p57 = por %p55, %p56
      %p58 = scmp.ne.s32.totalorder %s44, %s45
      %p59 = scmp.eq.s32.totalorder %s23, 7
      %p60 = por %p58, %p59
      %p62 = scmp.ne.s32.totalorder %s45, %s61
      %p63 = scmp.eq.s32.totalorder %s23, 0
      %p64 = por %p62, %p63
      %s66 = sadd.s32 %s65, 1
      %p69 = scmp.eq.s32.totalorder %s17, 7
      %p70 = scmp.ne.s32.totalorder %s65, %s67
      %p71 = scmp.eq.s32.totalorder %s17, 0
      %p72 = por %p70, %p71
      %p73 = scmp.ne.s32.totalorder %s65, %s67
      %p74 = scmp.eq.s32.totalorder %s22, 7
      %p75 = por %p73, %p74
      %p76 = scmp.ne.s32.totalorder %s67, %s68
      %p77 = scmp.eq.s32.totalorder %s22, 0
      %p78 = por %p76, %p77
      %p79 = scmp.ne.s32.totalorder %s67, %s68
      %p80 = scmp.eq.s32.totalorder %s23, 7
      %p81 = por %p79, %p80
      %p83 = scmp.ne.s32.totalorder %s68, %s82
      %p84 = scmp.eq.s32.totalorder %s23, 0
      %p85 = por %p83, %p84
      %s87 = sadd.s32 %s86, 1
      %p90 = scmp.eq.s32.totalorder %s17, 7
      %p91 = scmp.ne.s32.totalorder %s86, %s88
      %p92 = scmp.eq.s32.totalorder %s17, 0
      %p93 = por %p91, %p92
      %p94 = scmp.ne.s32.totalorder %s86, %s88
      %p95 = scmp.eq.s32.totalorder %s22, 7
      %p96 = por %p94, %p95
      %p97 = scmp.ne.s32.totalorder %s88, %s89
      %p98 = scmp.eq.s32.totalorder %s22, 0
      %p99 = por %p97, %p98
      %p100 = scmp.ne.s32.totalorder %s88, %s89
      %p101 = scmp.eq.s32.totalorder %s23, 7
      %p102 = por %p100, %p101
      %p104 = scmp.ne.s32.totalorder %s89, %s103
      %p105 = scmp.eq.s32.totalorder %s23, 0
      %p106 = por %p104, %p105
      %s108 = sadd.s32 %s107, 1
      %p111 = scmp.eq.s32.totalorder %s17, 7
      %p112 = scmp.ne.s32.totalorder %s107, %s109
      %p113 = scmp.eq.s32.totalorder %s17, 0
      %p114 = por %p112, %p113
      %p115 = scmp.ne.s32.totalorder %s107, %s109
      %p116 = scmp.eq.s32.totalorder %s22, 7
      %p117 = por %p115, %p116
      %p118 = scmp.ne.s32.totalorder %s109, %s110
      %p119 = scmp.eq.s32.totalorder %s22, 0
      %p120 = por %p118, %p119
      %p121 = scmp.ne.s32.totalorder %s109, %s110
      %p122 = scmp.eq.s32.totalorder %s23, 7
      %p123 = por %p121, %p122
      %p125 = scmp.ne.s32.totalorder %s110, %s124
      %p126 = scmp.eq.s32.totalorder %s23, 0
      %p127 = por %p125, %p126
      %s129 = sadd.s32 %s128, 1
      %p132 = scmp.eq.s32.totalorder %s17, 7
      %p133 = scmp.ne.s32.totalorder %s128, %s130
      %p134 = scmp.eq.s32.totalorder %s17, 0
      %p135 = por %p133, %p134
      %p136 = scmp.ne.s32.totalorder %s128, %s130
      %p137 = scmp.eq.s32.totalorder %s22, 7
      %p138 = por %p136, %p137
      %p139 = scmp.ne.s32.totalorder %s130, %s131
      %p140 = scmp.eq.s32.totalorder %s22, 0
      %p141 = por %p139, %p140
      %p142 = scmp.ne.s32.totalorder %s130, %s131
      %p143 = scmp.eq.s32.totalorder %s23, 7
      %p144 = por %p142, %p143
      %p146 = scmp.ne.s32.totalorder %s131, %s145
      %p147 = scmp.eq.s32.totalorder %s23, 0
      %p148 = por %p146, %p147
      %s149 = ssub.s32 %s24, %s36
      %s150 = ssub.s32 %s25, %s32
      %s151 = sor.u32 %s149, %s150
      %p152 = scmp.eq.s32.totalorder %s151, 0
      %s154 = sadd.s32 %s153, 1
      %s155 = scalar_select %p152, %s153, %s154
      %p158 = pneg %p152
      %p159 = scmp.eq.s32.totalorder %s17, 7
      %p160 = por %p158, %p159
      %p161 = scmp.ne.s32.totalorder %s153, %s156
      %p162 = scmp.eq.s32.totalorder %s17, 0
      %p163 = por %p161, %p162
      %p164 = scmp.ne.s32.totalorder %s153, %s156
      %p165 = scmp.eq.s32.totalorder %s22, 7
      %p166 = por %p164, %p165
      %p167 = scmp.ne.s32.totalorder %s156, %s157
      %p168 = scmp.eq.s32.totalorder %s22, 0
      %p169 = por %p167, %p168
      %p170 = scmp.ne.s32.totalorder %s156, %s157
      %p171 = scmp.eq.s32.totalorder %s23, 7
      %p172 = por %p170, %p171
      %p174 = scmp.ne.s32.totalorder %s157, %s173
      %p175 = scmp.eq.s32.totalorder %s23, 0
      %p176 = por %p174, %p175
      %p177 = scmp.le.s32.totalorder 1, %s17
      %p178 = scmp.lt.s32.totalorder %s17, 9
      %p179 = pnand %p177, %p178
      %p180 = pneg %p179
      // Predicated region
      $region9: #{tpu_custom_call.1} parent=5 // pred_check
        _
      $region10: #{tpu_custom_call.1} parent=5 // pred_check_branch
        %182 = sbr.rel (%p179) target = $region12
      $region11: #{tpu_custom_call.1} parent=5 // pred_region
        %s183 = ssub.s32 %s17, 1
        // Predicated region
        $region13: #{tpu_custom_call.1} parent=11 // pred_check
          %p184 = pneg %p78
        $region14: #{tpu_custom_call.1} parent=11 // pred_check_branch
          %186 = sbr.rel (%p184) target = $region16
        $region15: #{tpu_custom_call.1} parent=11 // pred_region
          _
        $region16: #{tpu_custom_call.1} parent=11 // pred_fallthru
          _
        // Predicated region
        $region17: #{tpu_custom_call.1} parent=11 // pred_check
          %p187 = pneg %p99
        $region18: #{tpu_custom_call.1} parent=11 // pred_check_branch
          %189 = sbr.rel (%p187) target = $region20
        $region19: #{tpu_custom_call.1} parent=11 // pred_region
          _
        $region20: #{tpu_custom_call.1} parent=11 // pred_fallthru
          _
        // Predicated region
        $region21: #{tpu_custom_call.1} parent=11 // pred_check
          %p190 = pneg %p120
        $region22: #{tpu_custom_call.1} parent=11 // pred_check_branch
          %192 = sbr.rel (%p190) target = $region24
        $region23: #{tpu_custom_call.1} parent=11 // pred_region
          _
        $region24: #{tpu_custom_call.1} parent=11 // pred_fallthru
          _
        // Predicated region
        $region25: #{tpu_custom_call.1} parent=11 // pred_check
          %p193 = pneg %p141
        $region26: #{tpu_custom_call.1} parent=11 // pred_check_branch
          %195 = sbr.rel (%p193) target = $region28
        $region27: #{tpu_custom_call.1} parent=11 // pred_region
          _
        $region28: #{tpu_custom_call.1} parent=11 // pred_fallthru
          _
      $region12: #{tpu_custom_call.1} parent=5 // pred_fallthru
        _
      %p196 = scmp.lt.s32.totalorder %s17, 8
      // Predicated region
      $region29: #{tpu_custom_call.1} parent=5 // pred_check
        %p197 = pneg %p196
      $region30: #{tpu_custom_call.1} parent=5 // pred_check_branch
        %199 = sbr.rel (%p197) target = $region32
      $region31: #{tpu_custom_call.1} parent=5 // pred_region
        // Predicated region
        $region33: #{tpu_custom_call.1} parent=31 // pred_check
          %p200 = pneg %p51
        $region34: #{tpu_custom_call.1} parent=31 // pred_check_branch
          %202 = sbr.rel (%p200) target = $region36
        $region35: #{tpu_custom_call.1} parent=31 // pred_region
          %s203 = sand.u32 %s41, 1
          %s204 = scalar_lea.sflag [#allocation3], %s203
          %s205 = sand.u32 %s41, 1
          %s206 = smul.addr %s205, 256
          %s207 = scalar_lea.vmem [#allocation2], %s206
          %s208 = smul.u32 16, %s25
          %s210 = ssub.s32 4096, 4096
          %211 = vsyncadd %s204, %s210
          %s212 = smul.addr %s24, 128
          %s213 = sadd.s32 %s208, %s212
          %s214 = smul.addr %s213, 128
          %s215 = scalar_lea.hbm %s0, %s214
          %s216 = sshll.u32 %s207, 4
          %s217 = int_to_ptr.vmem [resolvable:$true] %s216
          %222 = dma.hbm_to_vmem [thread:$0]  %s215, 4096, %s217, %s204, 8192, 2048, 128
        $region36: #{tpu_custom_call.1} parent=31 // pred_fallthru
          _
      $region32: #{tpu_custom_call.1} parent=5 // pred_fallthru
        _
      %p223 = scmp.le.s32.totalorder 1, %s17
      %p224 = scmp.lt.s32.totalorder %s17, 9
      %p225 = pnand %p223, %p224
      %p226 = pneg %p225
      // Predicated region
      $region37: #{tpu_custom_call.1} parent=5 // pred_check
        _
      $region38: #{tpu_custom_call.1} parent=5 // pred_check_branch
        %228 = sbr.rel (%p225) target = $region40
      $region39: #{tpu_custom_call.1} parent=5 // pred_region
        %s229 = ssub.s32 %s17, 1
        %s230 = sand.u32 %s44, 1
        %s231 = scalar_lea.sflag [#allocation3], %s230
        %s232 = sand.u32 %s44, 1
        %s233 = smul.addr %s232, 256
        %s234 = scalar_lea.vmem [#allocation2], %s233
        // Predicated region
        $region41: #{tpu_custom_call.1} parent=39 // pred_check
          %p235 = pneg %p57
        $region42: #{tpu_custom_call.1} parent=39 // pred_check_branch
          %237 = sbr.rel (%p235) target = $region44
        $region43: #{tpu_custom_call.1} parent=39 // pred_region
          %238 = dma.done %s231, 4096
        $region44: #{tpu_custom_call.1} parent=39 // pred_fallthru
          _
        %s239 = sand.u32 %s44, 1
        %s240 = scalar_lea.sflag [#allocation3], %s239
        %s241 = sand.u32 %s44, 1
        %s242 = smul.addr %s241, 256
        %s243 = scalar_lea.vmem [#allocation2], %s242
        %p244 = pneg %p57
        %p245 = pneg %p54
        %p246 = pneg %p78
        %p247 = pneg %p75
        %p248 = pneg %p99
        %p249 = pneg %p96
        %p250 = pneg %p120
        %p251 = pneg %p117
        %p252 = pneg %p141
        %p253 = pneg %p138
        %p254 = pneg %p169
        %p255 = pneg %p166
        %s256 = sand.u32 %s156, 1
        %s257 = scalar_lea.sflag [#allocation4], %s256
        %s258 = sand.u32 %s156, 1
        %s259 = smul.addr %s258, 256
        %s260 = scalar_lea.vmem [#allocation5], %s259
        %s261 = smul.u32 16, %s27
        %s262 = smul.u32 16, %s27
        %v263 = vld [vmem:[%s234] sm:$0xff]
        %v264 = vld [vmem:[%s234 + $0x8] sm:$0xff]
        %v265 = vld [vmem:[%s234 + $0x10] sm:$0xff]
        %v266 = vld [vmem:[%s234 + $0x18] sm:$0xff]
        %v267 = vld [vmem:[%s234 + $0x20] sm:$0xff]
        %v268 = vld [vmem:[%s234 + $0x28] sm:$0xff]
        %v269 = vld [vmem:[%s234 + $0x30] sm:$0xff]
        %v270 = vld [vmem:[%s234 + $0x38] sm:$0xff]
        %v271 = vld [vmem:[%s234 + $0x40] sm:$0xff]
        %v272 = vld [vmem:[%s234 + $0x48] sm:$0xff]
        %v273 = vld [vmem:[%s234 + $0x50] sm:$0xff]
        %v274 = vld [vmem:[%s234 + $0x58] sm:$0xff]
        %v275 = vld [vmem:[%s234 + $0x60] sm:$0xff]
        %v276 = vld [vmem:[%s234 + $0x68] sm:$0xff]
        %v277 = vld [vmem:[%s234 + $0x70] sm:$0xff]
        %v278 = vld [vmem:[%s234 + $0x78] sm:$0xff]
        %v279 = vld [vmem:[%s234 + $0x80] sm:$0xff]
        %v280 = vld [vmem:[%s234 + $0x88] sm:$0xff]
        %v281 = vld [vmem:[%s234 + $0x90] sm:$0xff]
        %v282 = vld [vmem:[%s234 + $0x98] sm:$0xff]
        %v283 = vld [vmem:[%s234 + $0xa0] sm:$0xff]
        %v284 = vld [vmem:[%s234 + $0xa8] sm:$0xff]
        %v285 = vld [vmem:[%s234 + $0xb0] sm:$0xff]
        %v286 = vld [vmem:[%s234 + $0xb8] sm:$0xff]
        %v287 = vld [vmem:[%s234 + $0xc0] sm:$0xff]
        %v288 = vld [vmem:[%s234 + $0xc8] sm:$0xff]
        %v289 = vld [vmem:[%s234 + $0xd0] sm:$0xff]
        %v290 = vld [vmem:[%s234 + $0xd8] sm:$0xff]
        %v291 = vld [vmem:[%s234 + $0xe0] sm:$0xff]
        %v292 = vld [vmem:[%s234 + $0xe8] sm:$0xff]
        %v293 = vld [vmem:[%s234 + $0xf0] sm:$0xff]
        %v294 = vld [vmem:[%s234 + $0xf8] sm:$0xff]
        %v295 = vld [vmem:[%s1] sm:$0xff]
        %v296 = vld [vmem:[%s1 + $0x8] sm:$0xff]
        %v297 = vld [vmem:[%s1 + $0x10] sm:$0xff]
        %v298 = vld [vmem:[%s1 + $0x18] sm:$0xff]
        %v299 = vld [vmem:[%s2] sm:$0xff]
        %v300 = vld [vmem:[%s2 + $0x8] sm:$0xff]
        %v301 = vld [vmem:[%s2 + $0x10] sm:$0xff]
        %v302 = vld [vmem:[%s2 + $0x18] sm:$0xff]
        %304 = vset.pattern.permute.xlu0 0
        %305 = vperm.xlu0 %304, %v299
        %v306 = vpop.permute.xlu0 %305
        %309 = vset.pattern.permute.xlu0 0
        %310 = vperm.xlu0 %309, %v300
        %v311 = vpop.permute.xlu0 %310
        %314 = vset.pattern.permute.xlu0 0
        %315 = vperm.xlu0 %314, %v301
        %v316 = vpop.permute.xlu0 %315
        %319 = vset.pattern.permute.xlu0 0
        %320 = vperm.xlu0 %319, %v302
        %v321 = vpop.permute.xlu0 %320
        %vm323 = vcmask 130048
        %v325 = vsel %vm323, %v295, 0
        %v328 = vsel %vm323, %v296, 0
        %v331 = vsel %vm323, %v297, 0
        %v334 = vsel %vm323, %v298, 0
        %336 = vmatprep.subr.mxu0 0.0
        %337 = vmatpush1.msra.mxu0 0.0
        %338 = vmatprep.subr.mxu0 0.0
        %339 = vmatpush1.msra.mxu0 0.0
        %340 = vmatprep.subr.mxu0 0.0
        %341 = vmatpush1.msra.mxu0 0.0
        %342 = vmatprep.subr.mxu0 0.0
        %343 = vmatpush1.msra.mxu0 0.0
        %344 = vmatprep.subr.mxu0 0.0
        %345 = vmatpush1.msra.mxu0 0.0
        %346 = vmatprep.subr.mxu0 0.0
        %347 = vmatpush1.msra.mxu0 0.0
        %348 = vmatprep.subr.mxu0 0.0
        %349 = vmatpush1.msra.mxu0 0.0
        %350 = vmatprep.subr.mxu0 0.0
        %351 = vmatpush1.msra.mxu0 0.0
        %352 = vmatprep.subr.mxu0 0.0
        %353 = vmatpush1.msra.mxu0 0.0
        %354 = vmatprep.subr.mxu0 0.0
        %355 = vmatpush1.msra.mxu0 0.0
        %356 = vmatprep.subr.mxu0 0.0
        %357 = vmatpush1.msra.mxu0 0.0
        %358 = vmatprep.subr.mxu0 0.0
        %359 = vmatpush1.msra.mxu0 0.0
        %360 = vmatprep.subr.mxu0 0.0
        %361 = vmatpush1.msra.mxu0 0.0
        %362 = vmatprep.subr.mxu0 0.0
        %363 = vmatpush1.msra.mxu0 0.0
        %364 = vmatprep.subr.mxu0 %v280
        %365 = vmatpush1.msra.mxu0 %v279
        %366 = vmatprep.subr.mxu0 %v264
        %367 = vmatpush1.msra.mxu0 %v263
        %368 = vmatprep.subr.mxu0 0.0
        %369 = vmatpush2.msra.mxu0 0.0
        %370 = vmatprep.subr.mxu0 0.0
        %371 = vmatpush2.msra.mxu0 0.0
        %372 = vmatprep.subr.mxu0 0.0
        %373 = vmatpush2.msra.mxu0 0.0
        %374 = vmatprep.subr.mxu0 0.0
        %375 = vmatpush2.msra.mxu0 0.0
        %376 = vmatprep.subr.mxu0 0.0
        %377 = vmatpush2.msra.mxu0 0.0
        %378 = vmatprep.subr.mxu0 0.0
        %379 = vmatpush2.msra.mxu0 0.0
        %380 = vmatprep.subr.mxu0 0.0
        %381 = vmatpush2.msra.mxu0 0.0
        %382 = vmatprep.subr.mxu0 0.0
        %383 = vmatpush2.msra.mxu0 0.0
        %384 = vmatprep.subr.mxu0 0.0
        %385 = vmatpush2.msra.mxu0 0.0
        %386 = vmatprep.subr.mxu0 0.0
        %387 = vmatpush2.msra.mxu0 0.0
        %388 = vmatprep.subr.mxu0 0.0
        %389 = vmatpush2.msra.mxu0 0.0
        %390 = vmatprep.subr.mxu0 0.0
        %391 = vmatpush2.msra.mxu0 0.0
        %392 = vmatprep.subr.mxu0 0.0
        %393 = vmatpush2.msra.mxu0 0.0
        %394 = vmatprep.subr.mxu0 0.0
        %395 = vmatpush2.msra.mxu0 0.0
        %396 = vmatprep.subr.mxu0 0.0
        %397 = vmatpush2.msra.mxu0 0.0
        %398 = vmatprep.subr.mxu0 0.0
        %399 = vmatpush2.msra.mxu0 0.0
        %400 = vmatprep.mubr.f32.mxu0 0.0
        %401 = vmatmul.mubr.f32.gmra.mxu0 %v325
        %v402 = vpop.f32.mrf.mxu0
        %v403 = vadd.f32 %v306, %v402
        %v404 = vpop.f32.mrf.mxu0
        %v405 = vadd.f32 %v306, %v404
        %406 = vmatprep.mubr.f32.mxu0 0.0
        %407 = vmatmul.mubr.f32.gmra.mxu0 %v328
        %v408 = vpop.f32.mrf.mxu0
        %v409 = vadd.f32 %v311, %v408
        %v410 = vpop.f32.mrf.mxu0
        %v411 = vadd.f32 %v311, %v410
        %412 = vmatprep.mubr.f32.mxu0 0.0
        %413 = vmatmul.mubr.f32.gmra.mxu0 %v331
        %v414 = vpop.f32.mrf.mxu0
        %v415 = vadd.f32 %v316, %v414
        %v416 = vpop.f32.mrf.mxu0
        %v417 = vadd.f32 %v316, %v416
        %418 = vmatprep.mubr.f32.mxu0 0.0
        %419 = vmatmul.mubr.f32.gmra.mxu0 %v334
        %v420 = vpop.f32.mrf.mxu0
        %v421 = vadd.f32 %v321, %v420
        %v422 = vpop.f32.mrf.mxu0
        %v423 = vadd.f32 %v321, %v422
        %424 = vdwg.mxu0
        %425 = vmatprep.subr.mxu0 0.0
        %426 = vmatpush1.msra.mxu0 0.0
        %427 = vmatprep.subr.mxu0 0.0
        %428 = vmatpush1.msra.mxu0 0.0
        %429 = vmatprep.subr.mxu0 0.0
        %430 = vmatpush1.msra.mxu0 0.0
        %431 = vmatprep.subr.mxu0 0.0
        %432 = vmatpush1.msra.mxu0 0.0
        %433 = vmatprep.subr.mxu0 0.0
        %434 = vmatpush1.msra.mxu0 0.0
        %435 = vmatprep.subr.mxu0 0.0
        %436 = vmatpush1.msra.mxu0 0.0
        %437 = vmatprep.subr.mxu0 0.0
        %438 = vmatpush1.msra.mxu0 0.0
        %439 = vmatprep.subr.mxu0 0.0
        %440 = vmatpush1.msra.mxu0 0.0
        %441 = vmatprep.subr.mxu0 0.0
        %442 = vmatpush1.msra.mxu0 0.0
        %443 = vmatprep.subr.mxu0 0.0
        %444 = vmatpush1.msra.mxu0 0.0
        %445 = vmatprep.subr.mxu0 0.0
        %446 = vmatpush1.msra.mxu0 0.0
        %447 = vmatprep.subr.mxu0 0.0
        %448 = vmatpush1.msra.mxu0 0.0
        %449 = vmatprep.subr.mxu0 0.0
        %450 = vmatpush1.msra.mxu0 0.0
        %451 = vmatprep.subr.mxu0 0.0
        %452 = vmatpush1.msra.mxu0 0.0
        %453 = vmatprep.subr.mxu0 %v282
        %454 = vmatpush1.msra.mxu0 %v281
        %455 = vmatprep.subr.mxu0 %v266
        %456 = vmatpush1.msra.mxu0 %v265
        %457 = vmatprep.subr.mxu0 0.0
        %458 = vmatpush2.msra.mxu0 0.0
        %459 = vmatprep.subr.mxu0 0.0
        %460 = vmatpush2.msra.mxu0 0.0
        %461 = vmatprep.subr.mxu0 0.0
        %462 = vmatpush2.msra.mxu0 0.0
        %463 = vmatprep.subr.mxu0 0.0
        %464 = vmatpush2.msra.mxu0 0.0
        %465 = vmatprep.subr.mxu0 0.0
        %466 = vmatpush2.msra.mxu0 0.0
        %467 = vmatprep.subr.mxu0 0.0
        %468 = vmatpush2.msra.mxu0 0.0
        %469 = vmatprep.subr.mxu0 0.0
        %470 = vmatpush2.msra.mxu0 0.0
        %471 = vmatprep.subr.mxu0 0.0
        %472 = vmatpush2.msra.mxu0 0.0
        %473 = vmatprep.subr.mxu0 0.0
        %474 = vmatpush2.msra.mxu0 0.0
        %475 = vmatprep.subr.mxu0 0.0
        %476 = vmatpush2.msra.mxu0 0.0
        %477 = vmatprep.subr.mxu0 0.0
        %478 = vmatpush2.msra.mxu0 0.0
        %479 = vmatprep.subr.mxu0 0.0
        %480 = vmatpush2.msra.mxu0 0.0
        %481 = vmatprep.subr.mxu0 0.0
        %482 = vmatpush2.msra.mxu0 0.0
        %483 = vmatprep.subr.mxu0 0.0
        %484 = vmatpush2.msra.mxu0 0.0
        %485 = vmatprep.subr.mxu0 0.0
        %486 = vmatpush2.msra.mxu0 0.0
        %487 = vmatprep.subr.mxu0 0.0
        %488 = vmatpush2.msra.mxu0 0.0
        %489 = vmatprep.mubr.f32.mxu0 0.0
        %490 = vmatmul.mubr.f32.gmra.mxu0 %v325
        %v491 = vpop.f32.mrf.mxu0
        %v492 = vadd.f32 %v306, %v491
        %v493 = vpop.f32.mrf.mxu0
        %v494 = vadd.f32 %v306, %v493
        %495 = vmatprep.mubr.f32.mxu0 0.0
        %496 = vmatmul.mubr.f32.gmra.mxu0 %v328
        %v497 = vpop.f32.mrf.mxu0
        %v498 = vadd.f32 %v311, %v497
        %v499 = vpop.f32.mrf.mxu0
        %v500 = vadd.f32 %v311, %v499
        %501 = vmatprep.mubr.f32.mxu0 0.0
        %502 = vmatmul.mubr.f32.gmra.mxu0 %v331
        %v503 = vpop.f32.mrf.mxu0
        %v504 = vadd.f32 %v316, %v503
        %v505 = vpop.f32.mrf.mxu0
        %v506 = vadd.f32 %v316, %v505
        %507 = vmatprep.mubr.f32.mxu0 0.0
        %508 = vmatmul.mubr.f32.gmra.mxu0 %v334
        %v509 = vpop.f32.mrf.mxu0
        %v510 = vadd.f32 %v321, %v509
        %v511 = vpop.f32.mrf.mxu0
        %v512 = vadd.f32 %v321, %v511
        %513 = vdwg.mxu0
        %514 = vmatprep.subr.mxu0 0.0
        %515 = vmatpush1.msra.mxu0 0.0
        %516 = vmatprep.subr.mxu0 0.0
        %517 = vmatpush1.msra.mxu0 0.0
        %518 = vmatprep.subr.mxu0 0.0
        %519 = vmatpush1.msra.mxu0 0.0
        %520 = vmatprep.subr.mxu0 0.0
        %521 = vmatpush1.msra.mxu0 0.0
        %522 = vmatprep.subr.mxu0 0.0
        %523 = vmatpush1.msra.mxu0 0.0
        %524 = vmatprep.subr.mxu0 0.0
        %525 = vmatpush1.msra.mxu0 0.0
        %526 = vmatprep.subr.mxu0 0.0
        %527 = vmatpush1.msra.mxu0 0.0
        %528 = vmatprep.subr.mxu0 0.0
        %529 = vmatpush1.msra.mxu0 0.0
        %530 = vmatprep.subr.mxu0 0.0
        %531 = vmatpush1.msra.mxu0 0.0
        %532 = vmatprep.subr.mxu0 0.0
        %533 = vmatpush1.msra.mxu0 0.0
        %534 = vmatprep.subr.mxu0 0.0
        %535 = vmatpush1.msra.mxu0 0.0
        %536 = vmatprep.subr.mxu0 0.0
        %537 = vmatpush1.msra.mxu0 0.0
        %538 = vmatprep.subr.mxu0 0.0
        %539 = vmatpush1.msra.mxu0 0.0
        %540 = vmatprep.subr.mxu0 0.0
        %541 = vmatpush1.msra.mxu0 0.0
        %542 = vmatprep.subr.mxu0 %v284
        %543 = vmatpush1.msra.mxu0 %v283
        %544 = vmatprep.subr.mxu0 %v268
        %545 = vmatpush1.msra.mxu0 %v267
        %546 = vmatprep.subr.mxu0 0.0
        %547 = vmatpush2.msra.mxu0 0.0
        %548 = vmatprep.subr.mxu0 0.0
        %549 = vmatpush2.msra.mxu0 0.0
        %550 = vmatprep.subr.mxu0 0.0
        %551 = vmatpush2.msra.mxu0 0.0
        %552 = vmatprep.subr.mxu0 0.0
        %553 = vmatpush2.msra.mxu0 0.0
        %554 = vmatprep.subr.mxu0 0.0
        %555 = vmatpush2.msra.mxu0 0.0
        %556 = vmatprep.subr.mxu0 0.0
        %557 = vmatpush2.msra.mxu0 0.0
        %558 = vmatprep.subr.mxu0 0.0
        %559 = vmatpush2.msra.mxu0 0.0
        %560 = vmatprep.subr.mxu0 0.0
        %561 = vmatpush2.msra.mxu0 0.0
        %562 = vmatprep.subr.mxu0 0.0
        %563 = vmatpush2.msra.mxu0 0.0
        %564 = vmatprep.subr.mxu0 0.0
        %565 = vmatpush2.msra.mxu0 0.0
        %566 = vmatprep.subr.mxu0 0.0
        %567 = vmatpush2.msra.mxu0 0.0
        %568 = vmatprep.subr.mxu0 0.0
        %569 = vmatpush2.msra.mxu0 0.0
        %570 = vmatprep.subr.mxu0 0.0
        %571 = vmatpush2.msra.mxu0 0.0
        %572 = vmatprep.subr.mxu0 0.0
        %573 = vmatpush2.msra.mxu0 0.0
        %574 = vmatprep.subr.mxu0 0.0
        %575 = vmatpush2.msra.mxu0 0.0
        %576 = vmatprep.subr.mxu0 0.0
        %577 = vmatpush2.msra.mxu0 0.0
        %578 = vmatprep.mubr.f32.mxu0 0.0
        %579 = vmatmul.mubr.f32.gmra.mxu0 %v325
        %v580 = vpop.f32.mrf.mxu0
        %v581 = vadd.f32 %v306, %v580
        %v582 = vpop.f32.mrf.mxu0
        %v583 = vadd.f32 %v306, %v582
        %584 = vmatprep.mubr.f32.mxu0 0.0
        %585 = vmatmul.mubr.f32.gmra.mxu0 %v328
        %v586 = vpop.f32.mrf.mxu0
        %v587 = vadd.f32 %v311, %v586
        %v588 = vpop.f32.mrf.mxu0
        %v589 = vadd.f32 %v311, %v588
        %590 = vmatprep.mubr.f32.mxu0 0.0
        %591 = vmatmul.mubr.f32.gmra.mxu0 %v331
        %v592 = vpop.f32.mrf.mxu0
        %v593 = vadd.f32 %v316, %v592
        %v594 = vpop.f32.mrf.mxu0
        %v595 = vadd.f32 %v316, %v594
        %596 = vmatprep.mubr.f32.mxu0 0.0
        %597 = vmatmul.mubr.f32.gmra.mxu0 %v334
        %v598 = vpop.f32.mrf.mxu0
        %v599 = vadd.f32 %v321, %v598
        %v600 = vpop.f32.mrf.mxu0
        %v601 = vadd.f32 %v321, %v600
        %602 = vdwg.mxu0
        %603 = vmatprep.subr.mxu0 0.0
        %604 = vmatpush1.msra.mxu0 0.0
        %605 = vmatprep.subr.mxu0 0.0
        %606 = vmatpush1.msra.mxu0 0.0
        %607 = vmatprep.subr.mxu0 0.0
        %608 = vmatpush1.msra.mxu0 0.0
        %609 = vmatprep.subr.mxu0 0.0
        %610 = vmatpush1.msra.mxu0 0.0
        %611 = vmatprep.subr.mxu0 0.0
        %612 = vmatpush1.msra.mxu0 0.0
        %613 = vmatprep.subr.mxu0 0.0
        %614 = vmatpush1.msra.mxu0 0.0
        %615 = vmatprep.subr.mxu0 0.0
        %616 = vmatpush1.msra.mxu0 0.0
        %617 = vmatprep.subr.mxu0 0.0
        %618 = vmatpush1.msra.mxu0 0.0
        %619 = vmatprep.subr.mxu0 0.0
        %620 = vmatpush1.msra.mxu0 0.0
        %621 = vmatprep.subr.mxu0 0.0
        %622 = vmatpush1.msra.mxu0 0.0
        %623 = vmatprep.subr.mxu0 0.0
        %624 = vmatpush1.msra.mxu0 0.0
        %625 = vmatprep.subr.mxu0 0.0
        %626 = vmatpush1.msra.mxu0 0.0
        %627 = vmatprep.subr.mxu0 0.0
        %628 = vmatpush1.msra.mxu0 0.0
        %629 = vmatprep.subr.mxu0 0.0
        %630 = vmatpush1.msra.mxu0 0.0
        %631 = vmatprep.subr.mxu0 %v286
        %632 = vmatpush1.msra.mxu0 %v285
        %633 = vmatprep.subr.mxu0 %v270
        %634 = vmatpush1.msra.mxu0 %v269
        %635 = vmatprep.subr.mxu0 0.0
        %636 = vmatpush2.msra.mxu0 0.0
        %637 = vmatprep.subr.mxu0 0.0
        %638 = vmatpush2.msra.mxu0 0.0
        %639 = vmatprep.subr.mxu0 0.0
        %640 = vmatpush2.msra.mxu0 0.0
        %641 = vmatprep.subr.mxu0 0.0
        %642 = vmatpush2.msra.mxu0 0.0
        %643 = vmatprep.subr.mxu0 0.0
        %644 = vmatpush2.msra.mxu0 0.0
        %645 = vmatprep.subr.mxu0 0.0
        %646 = vmatpush2.msra.mxu0 0.0
        %647 = vmatprep.subr.mxu0 0.0
        %648 = vmatpush2.msra.mxu0 0.0
        %649 = vmatprep.subr.mxu0 0.0
        %650 = vmatpush2.msra.mxu0 0.0
        %651 = vmatprep.subr.mxu0 0.0
        %652 = vmatpush2.msra.mxu0 0.0
        %653 = vmatprep.subr.mxu0 0.0
        %654 = vmatpush2.msra.mxu0 0.0
        %655 = vmatprep.subr.mxu0 0.0
        %656 = vmatpush2.msra.mxu0 0.0
        %657 = vmatprep.subr.mxu0 0.0
        %658 = vmatpush2.msra.mxu0 0.0
        %659 = vmatprep.subr.mxu0 0.0
        %660 = vmatpush2.msra.mxu0 0.0
        %661 = vmatprep.subr.mxu0 0.0
        %662 = vmatpush2.msra.mxu0 0.0
        %663 = vmatprep.subr.mxu0 0.0
        %664 = vmatpush2.msra.mxu0 0.0
        %665 = vmatprep.subr.mxu0 0.0
        %666 = vmatpush2.msra.mxu0 0.0
        %667 = vmatprep.mubr.f32.mxu0 0.0
        %668 = vmatmul.mubr.f32.gmra.mxu0 %v325
        %v669 = vpop.f32.mrf.mxu0
        %v670 = vadd.f32 %v306, %v669
        %v671 = vpop.f32.mrf.mxu0
        %v672 = vadd.f32 %v306, %v671
        %673 = vmatprep.mubr.f32.mxu0 0.0
        %674 = vmatmul.mubr.f32.gmra.mxu0 %v328
        %v675 = vpop.f32.mrf.mxu0
        %v676 = vadd.f32 %v311, %v675
        %v677 = vpop.f32.mrf.mxu0
        %v678 = vadd.f32 %v311, %v677
        %679 = vmatprep.mubr.f32.mxu0 0.0
        %680 = vmatmul.mubr.f32.gmra.mxu0 %v331
        %v681 = vpop.f32.mrf.mxu0
        %v682 = vadd.f32 %v316, %v681
        %v683 = vpop.f32.mrf.mxu0
        %v684 = vadd.f32 %v316, %v683
        %685 = vmatprep.mubr.f32.mxu0 0.0
        %686 = vmatmul.mubr.f32.gmra.mxu0 %v334
        %v687 = vpop.f32.mrf.mxu0
        %v688 = vadd.f32 %v321, %v687
        %v689 = vpop.f32.mrf.mxu0
        %v690 = vadd.f32 %v321, %v689
        %691 = vdwg.mxu0
        %692 = vmatprep.subr.mxu0 0.0
        %693 = vmatpush1.msra.mxu0 0.0
        %694 = vmatprep.subr.mxu0 0.0
        %695 = vmatpush1.msra.mxu0 0.0
        %696 = vmatprep.subr.mxu0 0.0
        %697 = vmatpush1.msra.mxu0 0.0
        %698 = vmatprep.subr.mxu0 0.0
        %699 = vmatpush1.msra.mxu0 0.0
        %700 = vmatprep.subr.mxu0 0.0
        %701 = vmatpush1.msra.mxu0 0.0
        %702 = vmatprep.subr.mxu0 0.0
        %703 = vmatpush1.msra.mxu0 0.0
        %704 = vmatprep.subr.mxu0 0.0
        %705 = vmatpush1.msra.mxu0 0.0
        %706 = vmatprep.subr.mxu0 0.0
        %707 = vmatpush1.msra.mxu0 0.0
        %708 = vmatprep.subr.mxu0 0.0
        %709 = vmatpush1.msra.mxu0 0.0
        %710 = vmatprep.subr.mxu0 0.0
        %711 = vmatpush1.msra.mxu0 0.0
        %712 = vmatprep.subr.mxu0 0.0
        %713 = vmatpush1.msra.mxu0 0.0
        %714 = vmatprep.subr.mxu0 0.0
        %715 = vmatpush1.msra.mxu0 0.0
        %716 = vmatprep.subr.mxu0 0.0
        %717 = vmatpush1.msra.mxu0 0.0
        %718 = vmatprep.subr.mxu0 0.0
        %719 = vmatpush1.msra.mxu0 0.0
        %720 = vmatprep.subr.mxu0 %v288
        %721 = vmatpush1.msra.mxu0 %v287
        %722 = vmatprep.subr.mxu0 %v272
        %723 = vmatpush1.msra.mxu0 %v271
        %724 = vmatprep.subr.mxu0 0.0
        %725 = vmatpush2.msra.mxu0 0.0
        %726 = vmatprep.subr.mxu0 0.0
        %727 = vmatpush2.msra.mxu0 0.0
        %728 = vmatprep.subr.mxu0 0.0
        %729 = vmatpush2.msra.mxu0 0.0
        %730 = vmatprep.subr.mxu0 0.0
        %731 = vmatpush2.msra.mxu0 0.0
        %732 = vmatprep.subr.mxu0 0.0
        %733 = vmatpush2.msra.mxu0 0.0
        %734 = vmatprep.subr.mxu0 0.0
        %735 = vmatpush2.msra.mxu0 0.0
        %736 = vmatprep.subr.mxu0 0.0
        %737 = vmatpush2.msra.mxu0 0.0
        %738 = vmatprep.subr.mxu0 0.0
        %739 = vmatpush2.msra.mxu0 0.0
        %740 = vmatprep.subr.mxu0 0.0
        %741 = vmatpush2.msra.mxu0 0.0
        %742 = vmatprep.subr.mxu0 0.0
        %743 = vmatpush2.msra.mxu0 0.0
        %744 = vmatprep.subr.mxu0 0.0
        %745 = vmatpush2.msra.mxu0 0.0
        %746 = vmatprep.subr.mxu0 0.0
        %747 = vmatpush2.msra.mxu0 0.0
        %748 = vmatprep.subr.mxu0 0.0
        %749 = vmatpush2.msra.mxu0 0.0
        %750 = vmatprep.subr.mxu0 0.0
        %751 = vmatpush2.msra.mxu0 0.0
        %752 = vmatprep.subr.mxu0 0.0
        %753 = vmatpush2.msra.mxu0 0.0
        %754 = vmatprep.subr.mxu0 0.0
        %755 = vmatpush2.msra.mxu0 0.0
        %756 = vmatprep.mubr.f32.mxu0 0.0
        %757 = vmatmul.mubr.f32.gmra.mxu0 %v325
        %v758 = vpop.f32.mrf.mxu0
        %v759 = vadd.f32 %v306, %v758
        %v760 = vpop.f32.mrf.mxu0
        %v761 = vadd.f32 %v306, %v760
        %762 = vmatprep.mubr.f32.mxu0 0.0
        %763 = vmatmul.mubr.f32.gmra.mxu0 %v328
        %v764 = vpop.f32.mrf.mxu0
        %v765 = vadd.f32 %v311, %v764
        %v766 = vpop.f32.mrf.mxu0
        %v767 = vadd.f32 %v311, %v766
        %768 = vmatprep.mubr.f32.mxu0 0.0
        %769 = vmatmul.mubr.f32.gmra.mxu0 %v331
        %v770 = vpop.f32.mrf.mxu0
        %v771 = vadd.f32 %v316, %v770
        %v772 = vpop.f32.mrf.mxu0
        %v773 = vadd.f32 %v316, %v772
        %774 = vmatprep.mubr.f32.mxu0 0.0
        %775 = vmatmul.mubr.f32.gmra.mxu0 %v334
        %v776 = vpop.f32.mrf.mxu0
        %v777 = vadd.f32 %v321, %v776
        %v778 = vpop.f32.mrf.mxu0
        %v779 = vadd.f32 %v321, %v778
        %780 = vdwg.mxu0
        %781 = vmatprep.subr.mxu0 0.0
        %782 = vmatpush1.msra.mxu0 0.0
        %783 = vmatprep.subr.mxu0 0.0
        %784 = vmatpush1.msra.mxu0 0.0
        %785 = vmatprep.subr.mxu0 0.0
        %786 = vmatpush1.msra.mxu0 0.0
        %787 = vmatprep.subr.mxu0 0.0
        %788 = vmatpush1.msra.mxu0 0.0
        %789 = vmatprep.subr.mxu0 0.0
        %790 = vmatpush1.msra.mxu0 0.0
        %791 = vmatprep.subr.mxu0 0.0
        %792 = vmatpush1.msra.mxu0 0.0
        %793 = vmatprep.subr.mxu0 0.0
        %794 = vmatpush1.msra.mxu0 0.0
        %795 = vmatprep.subr.mxu0 0.0
        %796 = vmatpush1.msra.mxu0 0.0
        %797 = vmatprep.subr.mxu0 0.0
        %798 = vmatpush1.msra.mxu0 0.0
        %799 = vmatprep.subr.mxu0 0.0
        %800 = vmatpush1.msra.mxu0 0.0
        %801 = vmatprep.subr.mxu0 0.0
        %802 = vmatpush1.msra.mxu0 0.0
        %803 = vmatprep.subr.mxu0 0.0
        %804 = vmatpush1.msra.mxu0 0.0
        %805 = vmatprep.subr.mxu0 0.0
        %806 = vmatpush1.msra.mxu0 0.0
        %807 = vmatprep.subr.mxu0 0.0
        %808 = vmatpush1.msra.mxu0 0.0
        %809 = vmatprep.subr.mxu0 %v290
        %810 = vmatpush1.msra.mxu0 %v289
        %811 = vmatprep.subr.mxu0 %v274
        %812 = vmatpush1.msra.mxu0 %v273
        %813 = vmatprep.subr.mxu0 0.0
        %814 = vmatpush2.msra.mxu0 0.0
        %815 = vmatprep.subr.mxu0 0.0
        %816 = vmatpush2.msra.mxu0 0.0
        %817 = vmatprep.subr.mxu0 0.0
        %818 = vmatpush2.msra.mxu0 0.0
        %819 = vmatprep.subr.mxu0 0.0
        %820 = vmatpush2.msra.mxu0 0.0
        %821 = vmatprep.subr.mxu0 0.0
        %822 = vmatpush2.msra.mxu0 0.0
        %823 = vmatprep.subr.mxu0 0.0
        %824 = vmatpush2.msra.mxu0 0.0
        %825 = vmatprep.subr.mxu0 0.0
        %826 = vmatpush2.msra.mxu0 0.0
        %827 = vmatprep.subr.mxu0 0.0
        %828 = vmatpush2.msra.mxu0 0.0
        %829 = vmatprep.subr.mxu0 0.0
        %830 = vmatpush2.msra.mxu0 0.0
        %831 = vmatprep.subr.mxu0 0.0
        %832 = vmatpush2.msra.mxu0 0.0
        %833 = vmatprep.subr.mxu0 0.0
        %834 = vmatpush2.msra.mxu0 0.0
        %835 = vmatprep.subr.mxu0 0.0
        %836 = vmatpush2.msra.mxu0 0.0
        %837 = vmatprep.subr.mxu0 0.0
        %838 = vmatpush2.msra.mxu0 0.0
        %839 = vmatprep.subr.mxu0 0.0
        %840 = vmatpush2.msra.mxu0 0.0
        %841 = vmatprep.subr.mxu0 0.0
        %842 = vmatpush2.msra.mxu0 0.0
        %843 = vmatprep.subr.mxu0 0.0
        %844 = vmatpush2.msra.mxu0 0.0
        %845 = vmatprep.mubr.f32.mxu0 0.0
        %846 = vmatmul.mubr.f32.gmra.mxu0 %v325
        %v847 = vpop.f32.mrf.mxu0
        %v848 = vadd.f32 %v306, %v847
        %v849 = vpop.f32.mrf.mxu0
        %v850 = vadd.f32 %v306, %v849
        %851 = vmatprep.mubr.f32.mxu0 0.0
        %852 = vmatmul.mubr.f32.gmra.mxu0 %v328
        %v853 = vpop.f32.mrf.mxu0
        %v854 = vadd.f32 %v311, %v853
        %v855 = vpop.f32.mrf.mxu0
        %v856 = vadd.f32 %v311, %v855
        %857 = vmatprep.mubr.f32.mxu0 0.0
        %858 = vmatmul.mubr.f32.gmra.mxu0 %v331
        %v859 = vpop.f32.mrf.mxu0
        %v860 = vadd.f32 %v316, %v859
        %v861 = vpop.f32.mrf.mxu0
        %v862 = vadd.f32 %v316, %v861
        %863 = vmatprep.mubr.f32.mxu0 0.0
        %864 = vmatmul.mubr.f32.gmra.mxu0 %v334
        %v865 = vpop.f32.mrf.mxu0
        %v866 = vadd.f32 %v321, %v865
        %v867 = vpop.f32.mrf.mxu0
        %v868 = vadd.f32 %v321, %v867
        %869 = vdwg.mxu0
        %870 = vmatprep.subr.mxu0 0.0
        %871 = vmatpush1.msra.mxu0 0.0
        %872 = vmatprep.subr.mxu0 0.0
        %873 = vmatpush1.msra.mxu0 0.0
        %874 = vmatprep.subr.mxu0 0.0
        %875 = vmatpush1.msra.mxu0 0.0
        %876 = vmatprep.subr.mxu0 0.0
        %877 = vmatpush1.msra.mxu0 0.0
        %878 = vmatprep.subr.mxu0 0.0
        %879 = vmatpush1.msra.mxu0 0.0
        %880 = vmatprep.subr.mxu0 0.0
        %881 = vmatpush1.msra.mxu0 0.0
        %882 = vmatprep.subr.mxu0 0.0
        %883 = vmatpush1.msra.mxu0 0.0
        %884 = vmatprep.subr.mxu0 0.0
        %885 = vmatpush1.msra.mxu0 0.0
        %886 = vmatprep.subr.mxu0 0.0
        %887 = vmatpush1.msra.mxu0 0.0
        %888 = vmatprep.subr.mxu0 0.0
        %889 = vmatpush1.msra.mxu0 0.0
        %890 = vmatprep.subr.mxu0 0.0
        %891 = vmatpush1.msra.mxu0 0.0
        %892 = vmatprep.subr.mxu0 0.0
        %893 = vmatpush1.msra.mxu0 0.0
        %894 = vmatprep.subr.mxu0 0.0
        %895 = vmatpush1.msra.mxu0 0.0
        %896 = vmatprep.subr.mxu0 0.0
        %897 = vmatpush1.msra.mxu0 0.0
        %898 = vmatprep.subr.mxu0 %v292
        %899 = vmatpush1.msra.mxu0 %v291
        %900 = vmatprep.subr.mxu0 %v276
        %901 = vmatpush1.msra.mxu0 %v275
        %902 = vmatprep.subr.mxu0 0.0
        %903 = vmatpush2.msra.mxu0 0.0
        %904 = vmatprep.subr.mxu0 0.0
        %905 = vmatpush2.msra.mxu0 0.0
        %906 = vmatprep.subr.mxu0 0.0
        %907 = vmatpush2.msra.mxu0 0.0
        %908 = vmatprep.subr.mxu0 0.0
        %909 = vmatpush2.msra.mxu0 0.0
        %910 = vmatprep.subr.mxu0 0.0
        %911 = vmatpush2.msra.mxu0 0.0
        %912 = vmatprep.subr.mxu0 0.0
        %913 = vmatpush2.msra.mxu0 0.0
        %914 = vmatprep.subr.mxu0 0.0
        %915 = vmatpush2.msra.mxu0 0.0
        %916 = vmatprep.subr.mxu0 0.0
        %917 = vmatpush2.msra.mxu0 0.0
        %918 = vmatprep.subr.mxu0 0.0
        %919 = vmatpush2.msra.mxu0 0.0
        %920 = vmatprep.subr.mxu0 0.0
        %921 = vmatpush2.msra.mxu0 0.0
        %922 = vmatprep.subr.mxu0 0.0
        %923 = vmatpush2.msra.mxu0 0.0
        %924 = vmatprep.subr.mxu0 0.0
        %925 = vmatpush2.msra.mxu0 0.0
        %926 = vmatprep.subr.mxu0 0.0
        %927 = vmatpush2.msra.mxu0 0.0
        %928 = vmatprep.subr.mxu0 0.0
        %929 = vmatpush2.msra.mxu0 0.0
        %930 = vmatprep.subr.mxu0 0.0
        %931 = vmatpush2.msra.mxu0 0.0
        %932 = vmatprep.subr.mxu0 0.0
        %933 = vmatpush2.msra.mxu0 0.0
        %934 = vmatprep.mubr.f32.mxu0 0.0
        %935 = vmatmul.mubr.f32.gmra.mxu0 %v325
        %v936 = vpop.f32.mrf.mxu0
        %v937 = vadd.f32 %v306, %v936
        %v938 = vpop.f32.mrf.mxu0
        %v939 = vadd.f32 %v306, %v938
        %940 = vmatprep.mubr.f32.mxu0 0.0
        %941 = vmatmul.mubr.f32.gmra.mxu0 %v328
        %v942 = vpop.f32.mrf.mxu0
        %v943 = vadd.f32 %v311, %v942
        %v944 = vpop.f32.mrf.mxu0
        %v945 = vadd.f32 %v311, %v944
        %946 = vmatprep.mubr.f32.mxu0 0.0
        %947 = vmatmul.mubr.f32.gmra.mxu0 %v331
        %v948 = vpop.f32.mrf.mxu0
        %v949 = vadd.f32 %v316, %v948
        %v950 = vpop.f32.mrf.mxu0
        %v951 = vadd.f32 %v316, %v950
        %952 = vmatprep.mubr.f32.mxu0 0.0
        %953 = vmatmul.mubr.f32.gmra.mxu0 %v334
        %v954 = vpop.f32.mrf.mxu0
        %v955 = vadd.f32 %v321, %v954
        %v956 = vpop.f32.mrf.mxu0
        %v957 = vadd.f32 %v321, %v956
        %958 = vdwg.mxu0
        %959 = vmatprep.subr.mxu0 0.0
        %960 = vmatpush1.msra.mxu0 0.0
        %961 = vmatprep.subr.mxu0 0.0
        %962 = vmatpush1.msra.mxu0 0.0
        %963 = vmatprep.subr.mxu0 0.0
        %964 = vmatpush1.msra.mxu0 0.0
        %965 = vmatprep.subr.mxu0 0.0
        %966 = vmatpush1.msra.mxu0 0.0
        %967 = vmatprep.subr.mxu0 0.0
        %968 = vmatpush1.msra.mxu0 0.0
        %969 = vmatprep.subr.mxu0 0.0
        %970 = vmatpush1.msra.mxu0 0.0
        %971 = vmatprep.subr.mxu0 0.0
        %972 = vmatpush1.msra.mxu0 0.0
        %973 = vmatprep.subr.mxu0 0.0
        %974 = vmatpush1.msra.mxu0 0.0
        %975 = vmatprep.subr.mxu0 0.0
        %976 = vmatpush1.msra.mxu0 0.0
        %977 = vmatprep.subr.mxu0 0.0
        %978 = vmatpush1.msra.mxu0 0.0
        %979 = vmatprep.subr.mxu0 0.0
        %980 = vmatpush1.msra.mxu0 0.0
        %981 = vmatprep.subr.mxu0 0.0
        %982 = vmatpush1.msra.mxu0 0.0
        %983 = vmatprep.subr.mxu0 0.0
        %984 = vmatpush1.msra.mxu0 0.0
        %985 = vmatprep.subr.mxu0 0.0
        %986 = vmatpush1.msra.mxu0 0.0
        %987 = vmatprep.subr.mxu0 %v294
        %988 = vmatpush1.msra.mxu0 %v293
        %989 = vmatprep.subr.mxu0 %v278
        %990 = vmatpush1.msra.mxu0 %v277
        %991 = vmatprep.subr.mxu0 0.0
        %992 = vmatpush2.msra.mxu0 0.0
        %993 = vmatprep.subr.mxu0 0.0
        %994 = vmatpush2.msra.mxu0 0.0
        %995 = vmatprep.subr.mxu0 0.0
        %996 = vmatpush2.msra.mxu0 0.0
        %997 = vmatprep.subr.mxu0 0.0
        %998 = vmatpush2.msra.mxu0 0.0
        %999 = vmatprep.subr.mxu0 0.0
        %1000 = vmatpush2.msra.mxu0 0.0
        %1001 = vmatprep.subr.mxu0 0.0
        %1002 = vmatpush2.msra.mxu0 0.0
        %1003 = vmatprep.subr.mxu0 0.0
        %1004 = vmatpush2.msra.mxu0 0.0
        %1005 = vmatprep.subr.mxu0 0.0
        %1006 = vmatpush2.msra.mxu0 0.0
        %1007 = vmatprep.subr.mxu0 0.0
        %1008 = vmatpush2.msra.mxu0 0.0
        %1009 = vmatprep.subr.mxu0 0.0
        %1010 = vmatpush2.msra.mxu0 0.0
        %1011 = vmatprep.subr.mxu0 0.0
        %1012 = vmatpush2.msra.mxu0 0.0
        %1013 = vmatprep.subr.mxu0 0.0
        %1014 = vmatpush2.msra.mxu0 0.0
        %1015 = vmatprep.subr.mxu0 0.0
        %1016 = vmatpush2.msra.mxu0 0.0
        %1017 = vmatprep.subr.mxu0 0.0
        %1018 = vmatpush2.msra.mxu0 0.0
        %1019 = vmatprep.subr.mxu0 0.0
        %1020 = vmatpush2.msra.mxu0 0.0
        %1021 = vmatprep.subr.mxu0 0.0
        %1022 = vmatpush2.msra.mxu0 0.0
        %1023 = vmatprep.mubr.f32.mxu0 0.0
        %1024 = vmatmul.mubr.f32.gmra.mxu0 %v325
        %v1025 = vpop.f32.mrf.mxu0
        %v1026 = vadd.f32 %v306, %v1025
        %v1027 = vpop.f32.mrf.mxu0
        %v1028 = vadd.f32 %v306, %v1027
        %1029 = vmatprep.mubr.f32.mxu0 0.0
        %1030 = vmatmul.mubr.f32.gmra.mxu0 %v328
        %v1031 = vpop.f32.mrf.mxu0
        %v1032 = vadd.f32 %v311, %v1031
        %v1033 = vpop.f32.mrf.mxu0
        %v1034 = vadd.f32 %v311, %v1033
        %1035 = vmatprep.mubr.f32.mxu0 0.0
        %1036 = vmatmul.mubr.f32.gmra.mxu0 %v331
        %v1037 = vpop.f32.mrf.mxu0
        %v1038 = vadd.f32 %v316, %v1037
        %v1039 = vpop.f32.mrf.mxu0
        %v1040 = vadd.f32 %v316, %v1039
        %1041 = vmatprep.mubr.f32.mxu0 0.0
        %1042 = vmatmul.mubr.f32.gmra.mxu0 %v334
        %v1043 = vpop.f32.mrf.mxu0
        %v1044 = vadd.f32 %v321, %v1043
        %v1045 = vpop.f32.mrf.mxu0
        %v1046 = vadd.f32 %v321, %v1045
        %1047 = vdwg.mxu0
        %v1048 = vadd.f32 %v403, %v409
        %v1049 = vadd.f32 %v1048, %v415
        %v1050 = vadd.f32 %v1049, %v421
        %v1051 = vrot.slane %v1050, 4
        %v1052 = vadd.f32 %v1050, %v1051
        %v1053 = vrot.slane %v1052, 2
        %v1054 = vadd.f32 %v1052, %v1053
        %v1055 = vrot.slane %v1054, 1
        %v1056 = vadd.f32 %v1054, %v1055
        %v1057 = vadd.f32 %v405, %v411
        %v1058 = vadd.f32 %v1057, %v417
        %v1059 = vadd.f32 %v1058, %v423
        %v1060 = vrot.slane %v1059, 4
        %v1061 = vadd.f32 %v1059, %v1060
        %v1062 = vrot.slane %v1061, 2
        %v1063 = vadd.f32 %v1061, %v1062
        %v1064 = vrot.slane %v1063, 1
        %v1065 = vadd.f32 %v1063, %v1064
        %v1066 = vadd.f32 %v492, %v498
        %v1067 = vadd.f32 %v1066, %v504
        %v1068 = vadd.f32 %v1067, %v510
        %v1069 = vrot.slane %v1068, 4
        %v1070 = vadd.f32 %v1068, %v1069
        %v1071 = vrot.slane %v1070, 2
        %v1072 = vadd.f32 %v1070, %v1071
        %v1073 = vrot.slane %v1072, 1
        %v1074 = vadd.f32 %v1072, %v1073
        %v1075 = vadd.f32 %v494, %v500
        %v1076 = vadd.f32 %v1075, %v506
        %v1077 = vadd.f32 %v1076, %v512
        %v1078 = vrot.slane %v1077, 4
        %v1079 = vadd.f32 %v1077, %v1078
        %v1080 = vrot.slane %v1079, 2
        %v1081 = vadd.f32 %v1079, %v1080
        %v1082 = vrot.slane %v1081, 1
        %v1083 = vadd.f32 %v1081, %v1082
        %v1084 = vadd.f32 %v581, %v587
        %v1085 = vadd.f32 %v1084, %v593
        %v1086 = vadd.f32 %v1085, %v599
        %v1087 = vrot.slane %v1086, 4
        %v1088 = vadd.f32 %v1086, %v1087
        %v1089 = vrot.slane %v1088, 2
        %v1090 = vadd.f32 %v1088, %v1089
        %v1091 = vrot.slane %v1090, 1
        %v1092 = vadd.f32 %v1090, %v1091
        %v1093 = vadd.f32 %v583, %v589
        %v1094 = vadd.f32 %v1093, %v595
        %v1095 = vadd.f32 %v1094, %v601
        %v1096 = vrot.slane %v1095, 4
        %v1097 = vadd.f32 %v1095, %v1096
        %v1098 = vrot.slane %v1097, 2
        %v1099 = vadd.f32 %v1097, %v1098
        %v1100 = vrot.slane %v1099, 1
        %v1101 = vadd.f32 %v1099, %v1100
        %v1102 = vadd.f32 %v670, %v676
        %v1103 = vadd.f32 %v1102, %v682
        %v1104 = vadd.f32 %v1103, %v688
        %v1105 = vrot.slane %v1104, 4
        %v1106 = vadd.f32 %v1104, %v1105
        %v1107 = vrot.slane %v1106, 2
        %v1108 = vadd.f32 %v1106, %v1107
        %v1109 = vrot.slane %v1108, 1
        %v1110 = vadd.f32 %v1108, %v1109
        %v1111 = vadd.f32 %v672, %v678
        %v1112 = vadd.f32 %v1111, %v684
        %v1113 = vadd.f32 %v1112, %v690
        %v1114 = vrot.slane %v1113, 4
        %v1115 = vadd.f32 %v1113, %v1114
        %v1116 = vrot.slane %v1115, 2
        %v1117 = vadd.f32 %v1115, %v1116
        %v1118 = vrot.slane %v1117, 1
        %v1119 = vadd.f32 %v1117, %v1118
        %v1120 = vadd.f32 %v759, %v765
        %v1121 = vadd.f32 %v1120, %v771
        %v1122 = vadd.f32 %v1121, %v777
        %v1123 = vrot.slane %v1122, 4
        %v1124 = vadd.f32 %v1122, %v1123
        %v1125 = vrot.slane %v1124, 2
        %v1126 = vadd.f32 %v1124, %v1125
        %v1127 = vrot.slane %v1126, 1
        %v1128 = vadd.f32 %v1126, %v1127
        %v1129 = vadd.f32 %v761, %v767
        %v1130 = vadd.f32 %v1129, %v773
        %v1131 = vadd.f32 %v1130, %v779
        %v1132 = vrot.slane %v1131, 4
        %v1133 = vadd.f32 %v1131, %v1132
        %v1134 = vrot.slane %v1133, 2
        %v1135 = vadd.f32 %v1133, %v1134
        %v1136 = vrot.slane %v1135, 1
        %v1137 = vadd.f32 %v1135, %v1136
        %v1138 = vadd.f32 %v848, %v854
        %v1139 = vadd.f32 %v1138, %v860
        %v1140 = vadd.f32 %v1139, %v866
        %v1141 = vrot.slane %v1140, 4
        %v1142 = vadd.f32 %v1140, %v1141
        %v1143 = vrot.slane %v1142, 2
        %v1144 = vadd.f32 %v1142, %v1143
        %v1145 = vrot.slane %v1144, 1
        %v1146 = vadd.f32 %v1144, %v1145
        %v1147 = vadd.f32 %v850, %v856
        %v1148 = vadd.f32 %v1147, %v862
        %v1149 = vadd.f32 %v1148, %v868
        %v1150 = vrot.slane %v1149, 4
        %v1151 = vadd.f32 %v1149, %v1150
        %v1152 = vrot.slane %v1151, 2
        %v1153 = vadd.f32 %v1151, %v1152
        %v1154 = vrot.slane %v1153, 1
        %v1155 = vadd.f32 %v1153, %v1154
        %v1156 = vadd.f32 %v937, %v943
        %v1157 = vadd.f32 %v1156, %v949
        %v1158 = vadd.f32 %v1157, %v955
        %v1159 = vrot.slane %v1158, 4
        %v1160 = vadd.f32 %v1158, %v1159
        %v1161 = vrot.slane %v1160, 2
        %v1162 = vadd.f32 %v1160, %v1161
        %v1163 = vrot.slane %v1162, 1
        %v1164 = vadd.f32 %v1162, %v1163
        %v1165 = vadd.f32 %v939, %v945
        %v1166 = vadd.f32 %v1165, %v951
        %v1167 = vadd.f32 %v1166, %v957
        %v1168 = vrot.slane %v1167, 4
        %v1169 = vadd.f32 %v1167, %v1168
        %v1170 = vrot.slane %v1169, 2
        %v1171 = vadd.f32 %v1169, %v1170
        %v1172 = vrot.slane %v1171, 1
        %v1173 = vadd.f32 %v1171, %v1172
        %v1174 = vadd.f32 %v1026, %v1032
        %v1175 = vadd.f32 %v1174, %v1038
        %v1176 = vadd.f32 %v1175, %v1044
        %v1177 = vrot.slane %v1176, 4
        %v1178 = vadd.f32 %v1176, %v1177
        %v1179 = vrot.slane %v1178, 2
        %v1180 = vadd.f32 %v1178, %v1179
        %v1181 = vrot.slane %v1180, 1
        %v1182 = vadd.f32 %v1180, %v1181
        %v1183 = vadd.f32 %v1028, %v1034
        %v1184 = vadd.f32 %v1183, %v1040
        %v1185 = vadd.f32 %v1184, %v1046
        %v1186 = vrot.slane %v1185, 4
        %v1187 = vadd.f32 %v1185, %v1186
        %v1188 = vrot.slane %v1187, 2
        %v1189 = vadd.f32 %v1187, %v1188
        %v1190 = vrot.slane %v1189, 1
        %v1191 = vadd.f32 %v1189, %v1190
        %v1192 = vmul.f32 %v1056, 0.03125
        %v1193 = vmul.f32 %v1065, 0.03125
        %v1194 = vmul.f32 %v1074, 0.03125
        %v1195 = vmul.f32 %v1083, 0.03125
        %v1196 = vmul.f32 %v1092, 0.03125
        %v1197 = vmul.f32 %v1101, 0.03125
        %v1198 = vmul.f32 %v1110, 0.03125
        %v1199 = vmul.f32 %v1119, 0.03125
        %v1200 = vmul.f32 %v1128, 0.03125
        %v1201 = vmul.f32 %v1137, 0.03125
        %v1202 = vmul.f32 %v1146, 0.03125
        %v1203 = vmul.f32 %v1155, 0.03125
        %v1204 = vmul.f32 %v1164, 0.03125
        %v1205 = vmul.f32 %v1173, 0.03125
        %v1206 = vmul.f32 %v1182, 0.03125
        %v1207 = vmul.f32 %v1191, 0.03125
        %v1208 = vsub.f32 %v403, %v1192
        %v1209 = vsub.f32 %v405, %v1193
        %v1210 = vsub.f32 %v492, %v1194
        %v1211 = vsub.f32 %v494, %v1195
        %v1212 = vsub.f32 %v581, %v1196
        %v1213 = vsub.f32 %v583, %v1197
        %v1214 = vsub.f32 %v670, %v1198
        %v1215 = vsub.f32 %v672, %v1199
        %v1216 = vsub.f32 %v759, %v1200
        %v1217 = vsub.f32 %v761, %v1201
        %v1218 = vsub.f32 %v848, %v1202
        %v1219 = vsub.f32 %v850, %v1203
        %v1220 = vsub.f32 %v937, %v1204
        %v1221 = vsub.f32 %v939, %v1205
        %v1222 = vsub.f32 %v1026, %v1206
        %v1223 = vsub.f32 %v1028, %v1207
        %v1224 = vsub.f32 %v409, %v1192
        %v1225 = vsub.f32 %v411, %v1193
        %v1226 = vsub.f32 %v498, %v1194
        %v1227 = vsub.f32 %v500, %v1195
        %v1228 = vsub.f32 %v587, %v1196
        %v1229 = vsub.f32 %v589, %v1197
        %v1230 = vsub.f32 %v676, %v1198
        %v1231 = vsub.f32 %v678, %v1199
        %v1232 = vsub.f32 %v765, %v1200
        %v1233 = vsub.f32 %v767, %v1201
        %v1234 = vsub.f32 %v854, %v1202
        %v1235 = vsub.f32 %v856, %v1203
        %v1236 = vsub.f32 %v943, %v1204
        %v1237 = vsub.f32 %v945, %v1205
        %v1238 = vsub.f32 %v1032, %v1206
        %v1239 = vsub.f32 %v1034, %v1207
        %v1240 = vsub.f32 %v415, %v1192
        %v1241 = vsub.f32 %v417, %v1193
        %v1242 = vsub.f32 %v504, %v1194
        %v1243 = vsub.f32 %v506, %v1195
        %v1244 = vsub.f32 %v593, %v1196
        %v1245 = vsub.f32 %v595, %v1197
        %v1246 = vsub.f32 %v682, %v1198
        %v1247 = vsub.f32 %v684, %v1199
        %v1248 = vsub.f32 %v771, %v1200
        %v1249 = vsub.f32 %v773, %v1201
        %v1250 = vsub.f32 %v860, %v1202
        %v1251 = vsub.f32 %v862, %v1203
        %v1252 = vsub.f32 %v949, %v1204
        %v1253 = vsub.f32 %v951, %v1205
        %v1254 = vsub.f32 %v1038, %v1206
        %v1255 = vsub.f32 %v1040, %v1207
        %v1256 = vsub.f32 %v421, %v1192
        %v1257 = vsub.f32 %v423, %v1193
        %v1258 = vsub.f32 %v510, %v1194
        %v1259 = vsub.f32 %v512, %v1195
        %v1260 = vsub.f32 %v599, %v1196
        %v1261 = vsub.f32 %v601, %v1197
        %v1262 = vsub.f32 %v688, %v1198
        %v1263 = vsub.f32 %v690, %v1199
        %v1264 = vsub.f32 %v777, %v1200
        %v1265 = vsub.f32 %v779, %v1201
        %v1266 = vsub.f32 %v866, %v1202
        %v1267 = vsub.f32 %v868, %v1203
        %v1268 = vsub.f32 %v955, %v1204
        %v1269 = vsub.f32 %v957, %v1205
        %v1270 = vsub.f32 %v1044, %v1206
        %v1271 = vsub.f32 %v1046, %v1207
        %v1272 = vmul.f32 %v1208, %v1208
        %v1273 = vmul.f32 %v1209, %v1209
        %v1274 = vmul.f32 %v1210, %v1210
        %v1275 = vmul.f32 %v1211, %v1211
        %v1276 = vmul.f32 %v1212, %v1212
        %v1277 = vmul.f32 %v1213, %v1213
        %v1278 = vmul.f32 %v1214, %v1214
        %v1279 = vmul.f32 %v1215, %v1215
        %v1280 = vmul.f32 %v1216, %v1216
        %v1281 = vmul.f32 %v1217, %v1217
        %v1282 = vmul.f32 %v1218, %v1218
        %v1283 = vmul.f32 %v1219, %v1219
        %v1284 = vmul.f32 %v1220, %v1220
        %v1285 = vmul.f32 %v1221, %v1221
        %v1286 = vmul.f32 %v1222, %v1222
        %v1287 = vmul.f32 %v1223, %v1223
        %v1288 = vmul.f32 %v1224, %v1224
        %v1289 = vmul.f32 %v1225, %v1225
        %v1290 = vmul.f32 %v1226, %v1226
        %v1291 = vmul.f32 %v1227, %v1227
        %v1292 = vmul.f32 %v1228, %v1228
        %v1293 = vmul.f32 %v1229, %v1229
        %v1294 = vmul.f32 %v1230, %v1230
        %v1295 = vmul.f32 %v1231, %v1231
        %v1296 = vmul.f32 %v1232, %v1232
        %v1297 = vmul.f32 %v1233, %v1233
        %v1298 = vmul.f32 %v1234, %v1234
        %v1299 = vmul.f32 %v1235, %v1235
        %v1300 = vmul.f32 %v1236, %v1236
        %v1301 = vmul.f32 %v1237, %v1237
        %v1302 = vmul.f32 %v1238, %v1238
        %v1303 = vmul.f32 %v1239, %v1239
        %v1304 = vmul.f32 %v1240, %v1240
        %v1305 = vmul.f32 %v1241, %v1241
        %v1306 = vmul.f32 %v1242, %v1242
        %v1307 = vmul.f32 %v1243, %v1243
        %v1308 = vmul.f32 %v1244, %v1244
        %v1309 = vmul.f32 %v1245, %v1245
        %v1310 = vmul.f32 %v1246, %v1246
        %v1311 = vmul.f32 %v1247, %v1247
        %v1312 = vmul.f32 %v1248, %v1248
        %v1313 = vmul.f32 %v1249, %v1249
        %v1314 = vmul.f32 %v1250, %v1250
        %v1315 = vmul.f32 %v1251, %v1251
        %v1316 = vmul.f32 %v1252, %v1252
        %v1317 = vmul.f32 %v1253, %v1253
        %v1318 = vmul.f32 %v1254, %v1254
        %v1319 = vmul.f32 %v1255, %v1255
        %v1320 = vmul.f32 %v1256, %v1256
        %v1321 = vmul.f32 %v1257, %v1257
        %v1322 = vmul.f32 %v1258, %v1258
        %v1323 = vmul.f32 %v1259, %v1259
        %v1324 = vmul.f32 %v1260, %v1260
        %v1325 = vmul.f32 %v1261, %v1261
        %v1326 = vmul.f32 %v1262, %v1262
        %v1327 = vmul.f32 %v1263, %v1263
        %v1328 = vmul.f32 %v1264, %v1264
        %v1329 = vmul.f32 %v1265, %v1265
        %v1330 = vmul.f32 %v1266, %v1266
        %v1331 = vmul.f32 %v1267, %v1267
        %v1332 = vmul.f32 %v1268, %v1268
        %v1333 = vmul.f32 %v1269, %v1269
        %v1334 = vmul.f32 %v1270, %v1270
        %v1335 = vmul.f32 %v1271, %v1271
        %v1336 = vadd.f32 %v1272, %v1288
        %v1337 = vadd.f32 %v1336, %v1304
        %v1338 = vadd.f32 %v1337, %v1320
        %v1339 = vrot.slane %v1338, 4
        %v1340 = vadd.f32 %v1338, %v1339
        %v1341 = vrot.slane %v1340, 2
        %v1342 = vadd.f32 %v1340, %v1341
        %v1343 = vrot.slane %v1342, 1
        %v1344 = vadd.f32 %v1342, %v1343
        %v1345 = vadd.f32 %v1273, %v1289
        %v1346 = vadd.f32 %v1345, %v1305
        %v1347 = vadd.f32 %v1346, %v1321
        %v1348 = vrot.slane %v1347, 4
        %v1349 = vadd.f32 %v1347, %v1348
        %v1350 = vrot.slane %v1349, 2
        %v1351 = vadd.f32 %v1349, %v1350
        %v1352 = vrot.slane %v1351, 1
        %v1353 = vadd.f32 %v1351, %v1352
        %v1354 = vadd.f32 %v1274, %v1290
        %v1355 = vadd.f32 %v1354, %v1306
        %v1356 = vadd.f32 %v1355, %v1322
        %v1357 = vrot.slane %v1356, 4
        %v1358 = vadd.f32 %v1356, %v1357
        %v1359 = vrot.slane %v1358, 2
        %v1360 = vadd.f32 %v1358, %v1359
        %v1361 = vrot.slane %v1360, 1
        %v1362 = vadd.f32 %v1360, %v1361
        %v1363 = vadd.f32 %v1275, %v1291
        %v1364 = vadd.f32 %v1363, %v1307
        %v1365 = vadd.f32 %v1364, %v1323
        %v1366 = vrot.slane %v1365, 4
        %v1367 = vadd.f32 %v1365, %v1366
        %v1368 = vrot.slane %v1367, 2
        %v1369 = vadd.f32 %v1367, %v1368
        %v1370 = vrot.slane %v1369, 1
        %v1371 = vadd.f32 %v1369, %v1370
        %v1372 = vadd.f32 %v1276, %v1292
        %v1373 = vadd.f32 %v1372, %v1308
        %v1374 = vadd.f32 %v1373, %v1324
        %v1375 = vrot.slane %v1374, 4
        %v1376 = vadd.f32 %v1374, %v1375
        %v1377 = vrot.slane %v1376, 2
        %v1378 = vadd.f32 %v1376, %v1377
        %v1379 = vrot.slane %v1378, 1
        %v1380 = vadd.f32 %v1378, %v1379
        %v1381 = vadd.f32 %v1277, %v1293
        %v1382 = vadd.f32 %v1381, %v1309
        %v1383 = vadd.f32 %v1382, %v1325
        %v1384 = vrot.slane %v1383, 4
        %v1385 = vadd.f32 %v1383, %v1384
        %v1386 = vrot.slane %v1385, 2
        %v1387 = vadd.f32 %v1385, %v1386
        %v1388 = vrot.slane %v1387, 1
        %v1389 = vadd.f32 %v1387, %v1388
        %v1390 = vadd.f32 %v1278, %v1294
        %v1391 = vadd.f32 %v1390, %v1310
        %v1392 = vadd.f32 %v1391, %v1326
        %v1393 = vrot.slane %v1392, 4
        %v1394 = vadd.f32 %v1392, %v1393
        %v1395 = vrot.slane %v1394, 2
        %v1396 = vadd.f32 %v1394, %v1395
        %v1397 = vrot.slane %v1396, 1
        %v1398 = vadd.f32 %v1396, %v1397
        %v1399 = vadd.f32 %v1279, %v1295
        %v1400 = vadd.f32 %v1399, %v1311
        %v1401 = vadd.f32 %v1400, %v1327
        %v1402 = vrot.slane %v1401, 4
        %v1403 = vadd.f32 %v1401, %v1402
        %v1404 = vrot.slane %v1403, 2
        %v1405 = vadd.f32 %v1403, %v1404
        %v1406 = vrot.slane %v1405, 1
        %v1407 = vadd.f32 %v1405, %v1406
        %v1408 = vadd.f32 %v1280, %v1296
        %v1409 = vadd.f32 %v1408, %v1312
        %v1410 = vadd.f32 %v1409, %v1328
        %v1411 = vrot.slane %v1410, 4
        %v1412 = vadd.f32 %v1410, %v1411
        %v1413 = vrot.slane %v1412, 2
        %v1414 = vadd.f32 %v1412, %v1413
        %v1415 = vrot.slane %v1414, 1
        %v1416 = vadd.f32 %v1414, %v1415
        %v1417 = vadd.f32 %v1281, %v1297
        %v1418 = vadd.f32 %v1417, %v1313
        %v1419 = vadd.f32 %v1418, %v1329
        %v1420 = vrot.slane %v1419, 4
        %v1421 = vadd.f32 %v1419, %v1420
        %v1422 = vrot.slane %v1421, 2
        %v1423 = vadd.f32 %v1421, %v1422
        %v1424 = vrot.slane %v1423, 1
        %v1425 = vadd.f32 %v1423, %v1424
        %v1426 = vadd.f32 %v1282, %v1298
        %v1427 = vadd.f32 %v1426, %v1314
        %v1428 = vadd.f32 %v1427, %v1330
        %v1429 = vrot.slane %v1428, 4
        %v1430 = vadd.f32 %v1428, %v1429
        %v1431 = vrot.slane %v1430, 2
        %v1432 = vadd.f32 %v1430, %v1431
        %v1433 = vrot.slane %v1432, 1
        %v1434 = vadd.f32 %v1432, %v1433
        %v1435 = vadd.f32 %v1283, %v1299
        %v1436 = vadd.f32 %v1435, %v1315
        %v1437 = vadd.f32 %v1436, %v1331
        %v1438 = vrot.slane %v1437, 4
        %v1439 = vadd.f32 %v1437, %v1438
        %v1440 = vrot.slane %v1439, 2
        %v1441 = vadd.f32 %v1439, %v1440
        %v1442 = vrot.slane %v1441, 1
        %v1443 = vadd.f32 %v1441, %v1442
        %v1444 = vadd.f32 %v1284, %v1300
        %v1445 = vadd.f32 %v1444, %v1316
        %v1446 = vadd.f32 %v1445, %v1332
        %v1447 = vrot.slane %v1446, 4
        %v1448 = vadd.f32 %v1446, %v1447
        %v1449 = vrot.slane %v1448, 2
        %v1450 = vadd.f32 %v1448, %v1449
        %v1451 = vrot.slane %v1450, 1
        %v1452 = vadd.f32 %v1450, %v1451
        %v1453 = vadd.f32 %v1285, %v1301
        %v1454 = vadd.f32 %v1453, %v1317
        %v1455 = vadd.f32 %v1454, %v1333
        %v1456 = vrot.slane %v1455, 4
        %v1457 = vadd.f32 %v1455, %v1456
        %v1458 = vrot.slane %v1457, 2
        %v1459 = vadd.f32 %v1457, %v1458
        %v1460 = vrot.slane %v1459, 1
        %v1461 = vadd.f32 %v1459, %v1460
        %v1462 = vadd.f32 %v1286, %v1302
        %v1463 = vadd.f32 %v1462, %v1318
        %v1464 = vadd.f32 %v1463, %v1334
        %v1465 = vrot.slane %v1464, 4
        %v1466 = vadd.f32 %v1464, %v1465
        %v1467 = vrot.slane %v1466, 2
        %v1468 = vadd.f32 %v1466, %v1467
        %v1469 = vrot.slane %v1468, 1
        %v1470 = vadd.f32 %v1468, %v1469
        %v1471 = vadd.f32 %v1287, %v1303
        %v1472 = vadd.f32 %v1471, %v1319
        %v1473 = vadd.f32 %v1472, %v1335
        %v1474 = vrot.slane %v1473, 4
        %v1475 = vadd.f32 %v1473, %v1474
        %v1476 = vrot.slane %v1475, 2
        %v1477 = vadd.f32 %v1475, %v1476
        %v1478 = vrot.slane %v1477, 1
        %v1479 = vadd.f32 %v1477, %v1478
        %v1480 = vmul.f32 %v1344, 0.03125
        %v1481 = vmul.f32 %v1353, 0.03125
        %v1482 = vmul.f32 %v1362, 0.03125
        %v1483 = vmul.f32 %v1371, 0.03125
        %v1484 = vmul.f32 %v1380, 0.03125
        %v1485 = vmul.f32 %v1389, 0.03125
        %v1486 = vmul.f32 %v1398, 0.03125
        %v1487 = vmul.f32 %v1407, 0.03125
        %v1488 = vmul.f32 %v1416, 0.03125
        %v1489 = vmul.f32 %v1425, 0.03125
        %v1490 = vmul.f32 %v1434, 0.03125
        %v1491 = vmul.f32 %v1443, 0.03125
        %v1492 = vmul.f32 %v1452, 0.03125
        %v1493 = vmul.f32 %v1461, 0.03125
        %v1494 = vmul.f32 %v1470, 0.03125
        %v1495 = vmul.f32 %v1479, 0.03125
        %v1496 = vadd.f32 %v1480, 1e-05
        %v1497 = vadd.f32 %v1481, 1e-05
        %v1498 = vadd.f32 %v1482, 1e-05
        %v1499 = vadd.f32 %v1483, 1e-05
        %v1500 = vadd.f32 %v1484, 1e-05
        %v1501 = vadd.f32 %v1485, 1e-05
        %v1502 = vadd.f32 %v1486, 1e-05
        %v1503 = vadd.f32 %v1487, 1e-05
        %v1504 = vadd.f32 %v1488, 1e-05
        %v1505 = vadd.f32 %v1489, 1e-05
        %v1506 = vadd.f32 %v1490, 1e-05
        %v1507 = vadd.f32 %v1491, 1e-05
        %v1508 = vadd.f32 %v1492, 1e-05
        %v1509 = vadd.f32 %v1493, 1e-05
        %v1510 = vadd.f32 %v1494, 1e-05
        %v1511 = vadd.f32 %v1495, 1e-05
        %v1512 = vrsqrt.pop %v1496
        %v1513 = vrsqrt.pop %v1497
        %v1514 = vrsqrt.pop %v1498
        %v1515 = vrsqrt.pop %v1499
        %v1516 = vrsqrt.pop %v1500
        %v1517 = vrsqrt.pop %v1501
        %v1518 = vrsqrt.pop %v1502
        %v1519 = vrsqrt.pop %v1503
        %v1520 = vrsqrt.pop %v1504
        %v1521 = vrsqrt.pop %v1505
        %v1522 = vrsqrt.pop %v1506
        %v1523 = vrsqrt.pop %v1507
        %v1524 = vrsqrt.pop %v1508
        %v1525 = vrsqrt.pop %v1509
        %v1526 = vrsqrt.pop %v1510
        %v1527 = vrsqrt.pop %v1511
        %v1528 = vmul.f32 %v1208, %v1512
        %v1529 = vmul.f32 %v1209, %v1513
        %v1530 = vmul.f32 %v1210, %v1514
        %v1531 = vmul.f32 %v1211, %v1515
        %v1532 = vmul.f32 %v1212, %v1516
        %v1533 = vmul.f32 %v1213, %v1517
        %v1534 = vmul.f32 %v1214, %v1518
        %v1535 = vmul.f32 %v1215, %v1519
        %v1536 = vmul.f32 %v1216, %v1520
        %v1537 = vmul.f32 %v1217, %v1521
        %v1538 = vmul.f32 %v1218, %v1522
        %v1539 = vmul.f32 %v1219, %v1523
        %v1540 = vmul.f32 %v1220, %v1524
        %v1541 = vmul.f32 %v1221, %v1525
        %v1542 = vmul.f32 %v1222, %v1526
        %v1543 = vmul.f32 %v1223, %v1527
        %v1544 = vmul.f32 %v1224, %v1512
        %v1545 = vmul.f32 %v1225, %v1513
        %v1546 = vmul.f32 %v1226, %v1514
        %v1547 = vmul.f32 %v1227, %v1515
        %v1548 = vmul.f32 %v1228, %v1516
        %v1549 = vmul.f32 %v1229, %v1517
        %v1550 = vmul.f32 %v1230, %v1518
        %v1551 = vmul.f32 %v1231, %v1519
        %v1552 = vmul.f32 %v1232, %v1520
        %v1553 = vmul.f32 %v1233, %v1521
        %v1554 = vmul.f32 %v1234, %v1522
        %v1555 = vmul.f32 %v1235, %v1523
        %v1556 = vmul.f32 %v1236, %v1524
        %v1557 = vmul.f32 %v1237, %v1525
        %v1558 = vmul.f32 %v1238, %v1526
        %v1559 = vmul.f32 %v1239, %v1527
        %v1560 = vmul.f32 %v1240, %v1512
        %v1561 = vmul.f32 %v1241, %v1513
        %v1562 = vmul.f32 %v1242, %v1514
        %v1563 = vmul.f32 %v1243, %v1515
        %v1564 = vmul.f32 %v1244, %v1516
        %v1565 = vmul.f32 %v1245, %v1517
        %v1566 = vmul.f32 %v1246, %v1518
        %v1567 = vmul.f32 %v1247, %v1519
        %v1568 = vmul.f32 %v1248, %v1520
        %v1569 = vmul.f32 %v1249, %v1521
        %v1570 = vmul.f32 %v1250, %v1522
        %v1571 = vmul.f32 %v1251, %v1523
        %v1572 = vmul.f32 %v1252, %v1524
        %v1573 = vmul.f32 %v1253, %v1525
        %v1574 = vmul.f32 %v1254, %v1526
        %v1575 = vmul.f32 %v1255, %v1527
        %v1576 = vmul.f32 %v1256, %v1512
        %v1577 = vmul.f32 %v1257, %v1513
        %v1578 = vmul.f32 %v1258, %v1514
        %v1579 = vmul.f32 %v1259, %v1515
        %v1580 = vmul.f32 %v1260, %v1516
        %v1581 = vmul.f32 %v1261, %v1517
        %v1582 = vmul.f32 %v1262, %v1518
        %v1583 = vmul.f32 %v1263, %v1519
        %v1584 = vmul.f32 %v1264, %v1520
        %v1585 = vmul.f32 %v1265, %v1521
        %v1586 = vmul.f32 %v1266, %v1522
        %v1587 = vmul.f32 %v1267, %v1523
        %v1588 = vmul.f32 %v1268, %v1524
        %v1589 = vmul.f32 %v1269, %v1525
        %v1590 = vmul.f32 %v1270, %v1526
        %v1591 = vmul.f32 %v1271, %v1527
        %v1592 = vld [vmem:[%s3] sm:$0xff]
        %v1593 = vld [vmem:[%s3 + $0x8] sm:$0xff]
        %v1594 = vld [vmem:[%s4] sm:$0xff]
        %v1595 = vld [vmem:[%s4 + $0x8] sm:$0xff]
        %1597 = vset.pattern.permute.xlu0 0
        %1598 = vperm.xlu0 %1597, %v1594
        %v1599 = vpop.permute.xlu0 %1598
        %1602 = vset.pattern.permute.xlu0 0
        %1603 = vperm.xlu0 %1602, %v1595
        %v1604 = vpop.permute.xlu0 %1603
        %vm1606 = vcmask 261120
        %v1608 = vsel %vm1606, %v1592, 0
        %v1611 = vsel %vm1606, %v1593, 0
        %1613 = vmatprep.subr.mxu0 0.0
        %1614 = vmatpush1.msra.mxu0 0.0
        %1615 = vmatprep.subr.mxu0 0.0
        %1616 = vmatpush1.msra.mxu0 0.0
        %1617 = vmatprep.subr.mxu0 0.0
        %1618 = vmatpush1.msra.mxu0 0.0
        %1619 = vmatprep.subr.mxu0 0.0
        %1620 = vmatpush1.msra.mxu0 0.0
        %1621 = vmatprep.subr.mxu0 0.0
        %1622 = vmatpush1.msra.mxu0 0.0
        %1623 = vmatprep.subr.mxu0 0.0
        %1624 = vmatpush1.msra.mxu0 0.0
        %1625 = vmatprep.subr.mxu0 0.0
        %1626 = vmatpush1.msra.mxu0 0.0
        %1627 = vmatprep.subr.mxu0 0.0
        %1628 = vmatpush1.msra.mxu0 0.0
        %1629 = vmatprep.subr.mxu0 0.0
        %1630 = vmatpush1.msra.mxu0 0.0
        %1631 = vmatprep.subr.mxu0 0.0
        %1632 = vmatpush1.msra.mxu0 0.0
        %1633 = vmatprep.subr.mxu0 0.0
        %1634 = vmatpush1.msra.mxu0 0.0
        %1635 = vmatprep.subr.mxu0 0.0
        %1636 = vmatpush1.msra.mxu0 0.0
        %1637 = vmatprep.subr.mxu0 %v1577
        %1638 = vmatpush1.msra.mxu0 %v1576
        %1639 = vmatprep.subr.mxu0 %v1561
        %1640 = vmatpush1.msra.mxu0 %v1560
        %1641 = vmatprep.subr.mxu0 %v1545
        %1642 = vmatpush1.msra.mxu0 %v1544
        %1643 = vmatprep.subr.mxu0 %v1529
        %1644 = vmatpush1.msra.mxu0 %v1528
        %1645 = vmatprep.subr.mxu0 0.0
        %1646 = vmatpush2.msra.mxu0 0.0
        %1647 = vmatprep.subr.mxu0 0.0
        %1648 = vmatpush2.msra.mxu0 0.0
        %1649 = vmatprep.subr.mxu0 0.0
        %1650 = vmatpush2.msra.mxu0 0.0
        %1651 = vmatprep.subr.mxu0 0.0
        %1652 = vmatpush2.msra.mxu0 0.0
        %1653 = vmatprep.subr.mxu0 0.0
        %1654 = vmatpush2.msra.mxu0 0.0
        %1655 = vmatprep.subr.mxu0 0.0
        %1656 = vmatpush2.msra.mxu0 0.0
        %1657 = vmatprep.subr.mxu0 0.0
        %1658 = vmatpush2.msra.mxu0 0.0
        %1659 = vmatprep.subr.mxu0 0.0
        %1660 = vmatpush2.msra.mxu0 0.0
        %1661 = vmatprep.subr.mxu0 0.0
        %1662 = vmatpush2.msra.mxu0 0.0
        %1663 = vmatprep.subr.mxu0 0.0
        %1664 = vmatpush2.msra.mxu0 0.0
        %1665 = vmatprep.subr.mxu0 0.0
        %1666 = vmatpush2.msra.mxu0 0.0
        %1667 = vmatprep.subr.mxu0 0.0
        %1668 = vmatpush2.msra.mxu0 0.0
        %1669 = vmatprep.subr.mxu0 0.0
        %1670 = vmatpush2.msra.mxu0 0.0
        %1671 = vmatprep.subr.mxu0 0.0
        %1672 = vmatpush2.msra.mxu0 0.0
        %1673 = vmatprep.subr.mxu0 0.0
        %1674 = vmatpush2.msra.mxu0 0.0
        %1675 = vmatprep.subr.mxu0 0.0
        %1676 = vmatpush2.msra.mxu0 0.0
        %1677 = vmatprep.mubr.f32.mxu0 0.0
        %1678 = vmatmul.mubr.f32.gmra.mxu0 %v1608
        %v1679 = vpop.f32.mrf.mxu0
        %v1680 = vadd.f32 %v1599, %v1679
        %v1681 = vpop.f32.mrf.mxu0
        %v1682 = vadd.f32 %v1599, %v1681
        %1683 = vmatprep.mubr.f32.mxu0 0.0
        %1684 = vmatmul.mubr.f32.gmra.mxu0 %v1611
        %v1685 = vpop.f32.mrf.mxu0
        %v1686 = vadd.f32 %v1604, %v1685
        %v1687 = vpop.f32.mrf.mxu0
        %v1688 = vadd.f32 %v1604, %v1687
        %1689 = vdwg.mxu0
        %1690 = vmatprep.subr.mxu0 0.0
        %1691 = vmatpush1.msra.mxu0 0.0
        %1692 = vmatprep.subr.mxu0 0.0
        %1693 = vmatpush1.msra.mxu0 0.0
        %1694 = vmatprep.subr.mxu0 0.0
        %1695 = vmatpush1.msra.mxu0 0.0
        %1696 = vmatprep.subr.mxu0 0.0
        %1697 = vmatpush1.msra.mxu0 0.0
        %1698 = vmatprep.subr.mxu0 0.0
        %1699 = vmatpush1.msra.mxu0 0.0
        %1700 = vmatprep.subr.mxu0 0.0
        %1701 = vmatpush1.msra.mxu0 0.0
        %1702 = vmatprep.subr.mxu0 0.0
        %1703 = vmatpush1.msra.mxu0 0.0
        %1704 = vmatprep.subr.mxu0 0.0
        %1705 = vmatpush1.msra.mxu0 0.0
        %1706 = vmatprep.subr.mxu0 0.0
        %1707 = vmatpush1.msra.mxu0 0.0
        %1708 = vmatprep.subr.mxu0 0.0
        %1709 = vmatpush1.msra.mxu0 0.0
        %1710 = vmatprep.subr.mxu0 0.0
        %1711 = vmatpush1.msra.mxu0 0.0
        %1712 = vmatprep.subr.mxu0 0.0
        %1713 = vmatpush1.msra.mxu0 0.0
        %1714 = vmatprep.subr.mxu0 %v1579
        %1715 = vmatpush1.msra.mxu0 %v1578
        %1716 = vmatprep.subr.mxu0 %v1563
        %1717 = vmatpush1.msra.mxu0 %v1562
        %1718 = vmatprep.subr.mxu0 %v1547
        %1719 = vmatpush1.msra.mxu0 %v1546
        %1720 = vmatprep.subr.mxu0 %v1531
        %1721 = vmatpush1.msra.mxu0 %v1530
        %1722 = vmatprep.subr.mxu0 0.0
        %1723 = vmatpush2.msra.mxu0 0.0
        %1724 = vmatprep.subr.mxu0 0.0
        %1725 = vmatpush2.msra.mxu0 0.0
        %1726 = vmatprep.subr.mxu0 0.0
        %1727 = vmatpush2.msra.mxu0 0.0
        %1728 = vmatprep.subr.mxu0 0.0
        %1729 = vmatpush2.msra.mxu0 0.0
        %1730 = vmatprep.subr.mxu0 0.0
        %1731 = vmatpush2.msra.mxu0 0.0
        %1732 = vmatprep.subr.mxu0 0.0
        %1733 = vmatpush2.msra.mxu0 0.0
        %1734 = vmatprep.subr.mxu0 0.0
        %1735 = vmatpush2.msra.mxu0 0.0
        %1736 = vmatprep.subr.mxu0 0.0
        %1737 = vmatpush2.msra.mxu0 0.0
        %1738 = vmatprep.subr.mxu0 0.0
        %1739 = vmatpush2.msra.mxu0 0.0
        %1740 = vmatprep.subr.mxu0 0.0
        %1741 = vmatpush2.msra.mxu0 0.0
        %1742 = vmatprep.subr.mxu0 0.0
        %1743 = vmatpush2.msra.mxu0 0.0
        %1744 = vmatprep.subr.mxu0 0.0
        %1745 = vmatpush2.msra.mxu0 0.0
        %1746 = vmatprep.subr.mxu0 0.0
        %1747 = vmatpush2.msra.mxu0 0.0
        %1748 = vmatprep.subr.mxu0 0.0
        %1749 = vmatpush2.msra.mxu0 0.0
        %1750 = vmatprep.subr.mxu0 0.0
        %1751 = vmatpush2.msra.mxu0 0.0
        %1752 = vmatprep.subr.mxu0 0.0
        %1753 = vmatpush2.msra.mxu0 0.0
        %1754 = vmatprep.mubr.f32.mxu0 0.0
        %1755 = vmatmul.mubr.f32.gmra.mxu0 %v1608
        %v1756 = vpop.f32.mrf.mxu0
        %v1757 = vadd.f32 %v1599, %v1756
        %v1758 = vpop.f32.mrf.mxu0
        %v1759 = vadd.f32 %v1599, %v1758
        %1760 = vmatprep.mubr.f32.mxu0 0.0
        %1761 = vmatmul.mubr.f32.gmra.mxu0 %v1611
        %v1762 = vpop.f32.mrf.mxu0
        %v1763 = vadd.f32 %v1604, %v1762
        %v1764 = vpop.f32.mrf.mxu0
        %v1765 = vadd.f32 %v1604, %v1764
        %1766 = vdwg.mxu0
        %1767 = vmatprep.subr.mxu0 0.0
        %1768 = vmatpush1.msra.mxu0 0.0
        %1769 = vmatprep.subr.mxu0 0.0
        %1770 = vmatpush1.msra.mxu0 0.0
        %1771 = vmatprep.subr.mxu0 0.0
        %1772 = vmatpush1.msra.mxu0 0.0
        %1773 = vmatprep.subr.mxu0 0.0
        %1774 = vmatpush1.msra.mxu0 0.0
        %1775 = vmatprep.subr.mxu0 0.0
        %1776 = vmatpush1.msra.mxu0 0.0
        %1777 = vmatprep.subr.mxu0 0.0
        %1778 = vmatpush1.msra.mxu0 0.0
        %1779 = vmatprep.subr.mxu0 0.0
        %1780 = vmatpush1.msra.mxu0 0.0
        %1781 = vmatprep.subr.mxu0 0.0
        %1782 = vmatpush1.msra.mxu0 0.0
        %1783 = vmatprep.subr.mxu0 0.0
        %1784 = vmatpush1.msra.mxu0 0.0
        %1785 = vmatprep.subr.mxu0 0.0
        %1786 = vmatpush1.msra.mxu0 0.0
        %1787 = vmatprep.subr.mxu0 0.0
        %1788 = vmatpush1.msra.mxu0 0.0
        %1789 = vmatprep.subr.mxu0 0.0
        %1790 = vmatpush1.msra.mxu0 0.0
        %1791 = vmatprep.subr.mxu0 %v1581
        %1792 = vmatpush1.msra.mxu0 %v1580
        %1793 = vmatprep.subr.mxu0 %v1565
        %1794 = vmatpush1.msra.mxu0 %v1564
        %1795 = vmatprep.subr.mxu0 %v1549
        %1796 = vmatpush1.msra.mxu0 %v1548
        %1797 = vmatprep.subr.mxu0 %v1533
        %1798 = vmatpush1.msra.mxu0 %v1532
        %1799 = vmatprep.subr.mxu0 0.0
        %1800 = vmatpush2.msra.mxu0 0.0
        %1801 = vmatprep.subr.mxu0 0.0
        %1802 = vmatpush2.msra.mxu0 0.0
        %1803 = vmatprep.subr.mxu0 0.0
        %1804 = vmatpush2.msra.mxu0 0.0
        %1805 = vmatprep.subr.mxu0 0.0
        %1806 = vmatpush2.msra.mxu0 0.0
        %1807 = vmatprep.subr.mxu0 0.0
        %1808 = vmatpush2.msra.mxu0 0.0
        %1809 = vmatprep.subr.mxu0 0.0
        %1810 = vmatpush2.msra.mxu0 0.0
        %1811 = vmatprep.subr.mxu0 0.0
        %1812 = vmatpush2.msra.mxu0 0.0
        %1813 = vmatprep.subr.mxu0 0.0
        %1814 = vmatpush2.msra.mxu0 0.0
        %1815 = vmatprep.subr.mxu0 0.0
        %1816 = vmatpush2.msra.mxu0 0.0
        %1817 = vmatprep.subr.mxu0 0.0
        %1818 = vmatpush2.msra.mxu0 0.0
        %1819 = vmatprep.subr.mxu0 0.0
        %1820 = vmatpush2.msra.mxu0 0.0
        %1821 = vmatprep.subr.mxu0 0.0
        %1822 = vmatpush2.msra.mxu0 0.0
        %1823 = vmatprep.subr.mxu0 0.0
        %1824 = vmatpush2.msra.mxu0 0.0
        %1825 = vmatprep.subr.mxu0 0.0
        %1826 = vmatpush2.msra.mxu0 0.0
        %1827 = vmatprep.subr.mxu0 0.0
        %1828 = vmatpush2.msra.mxu0 0.0
        %1829 = vmatprep.subr.mxu0 0.0
        %1830 = vmatpush2.msra.mxu0 0.0
        %1831 = vmatprep.mubr.f32.mxu0 0.0
        %1832 = vmatmul.mubr.f32.gmra.mxu0 %v1608
        %v1833 = vpop.f32.mrf.mxu0
        %v1834 = vadd.f32 %v1599, %v1833
        %v1835 = vpop.f32.mrf.mxu0
        %v1836 = vadd.f32 %v1599, %v1835
        %1837 = vmatprep.mubr.f32.mxu0 0.0
        %1838 = vmatmul.mubr.f32.gmra.mxu0 %v1611
        %v1839 = vpop.f32.mrf.mxu0
        %v1840 = vadd.f32 %v1604, %v1839
        %v1841 = vpop.f32.mrf.mxu0
        %v1842 = vadd.f32 %v1604, %v1841
        %1843 = vdwg.mxu0
        %1844 = vmatprep.subr.mxu0 0.0
        %1845 = vmatpush1.msra.mxu0 0.0
        %1846 = vmatprep.subr.mxu0 0.0
        %1847 = vmatpush1.msra.mxu0 0.0
        %1848 = vmatprep.subr.mxu0 0.0
        %1849 = vmatpush1.msra.mxu0 0.0
        %1850 = vmatprep.subr.mxu0 0.0
        %1851 = vmatpush1.msra.mxu0 0.0
        %1852 = vmatprep.subr.mxu0 0.0
        %1853 = vmatpush1.msra.mxu0 0.0
        %1854 = vmatprep.subr.mxu0 0.0
        %1855 = vmatpush1.msra.mxu0 0.0
        %1856 = vmatprep.subr.mxu0 0.0
        %1857 = vmatpush1.msra.mxu0 0.0
        %1858 = vmatprep.subr.mxu0 0.0
        %1859 = vmatpush1.msra.mxu0 0.0
        %1860 = vmatprep.subr.mxu0 0.0
        %1861 = vmatpush1.msra.mxu0 0.0
        %1862 = vmatprep.subr.mxu0 0.0
        %1863 = vmatpush1.msra.mxu0 0.0
        %1864 = vmatprep.subr.mxu0 0.0
        %1865 = vmatpush1.msra.mxu0 0.0
        %1866 = vmatprep.subr.mxu0 0.0
        %1867 = vmatpush1.msra.mxu0 0.0
        %1868 = vmatprep.subr.mxu0 %v1583
        %1869 = vmatpush1.msra.mxu0 %v1582
        %1870 = vmatprep.subr.mxu0 %v1567
        %1871 = vmatpush1.msra.mxu0 %v1566
        %1872 = vmatprep.subr.mxu0 %v1551
        %1873 = vmatpush1.msra.mxu0 %v1550
        %1874 = vmatprep.subr.mxu0 %v1535
        %1875 = vmatpush1.msra.mxu0 %v1534
        %1876 = vmatprep.subr.mxu0 0.0
        %1877 = vmatpush2.msra.mxu0 0.0
        %1878 = vmatprep.subr.mxu0 0.0
        %1879 = vmatpush2.msra.mxu0 0.0
        %1880 = vmatprep.subr.mxu0 0.0
        %1881 = vmatpush2.msra.mxu0 0.0
        %1882 = vmatprep.subr.mxu0 0.0
        %1883 = vmatpush2.msra.mxu0 0.0
        %1884 = vmatprep.subr.mxu0 0.0
        %1885 = vmatpush2.msra.mxu0 0.0
        %1886 = vmatprep.subr.mxu0 0.0
        %1887 = vmatpush2.msra.mxu0 0.0
        %1888 = vmatprep.subr.mxu0 0.0
        %1889 = vmatpush2.msra.mxu0 0.0
        %1890 = vmatprep.subr.mxu0 0.0
        %1891 = vmatpush2.msra.mxu0 0.0
        %1892 = vmatprep.subr.mxu0 0.0
        %1893 = vmatpush2.msra.mxu0 0.0
        %1894 = vmatprep.subr.mxu0 0.0
        %1895 = vmatpush2.msra.mxu0 0.0
        %1896 = vmatprep.subr.mxu0 0.0
        %1897 = vmatpush2.msra.mxu0 0.0
        %1898 = vmatprep.subr.mxu0 0.0
        %1899 = vmatpush2.msra.mxu0 0.0
        %1900 = vmatprep.subr.mxu0 0.0
        %1901 = vmatpush2.msra.mxu0 0.0
        %1902 = vmatprep.subr.mxu0 0.0
        %1903 = vmatpush2.msra.mxu0 0.0
        %1904 = vmatprep.subr.mxu0 0.0
        %1905 = vmatpush2.msra.mxu0 0.0
        %1906 = vmatprep.subr.mxu0 0.0
        %1907 = vmatpush2.msra.mxu0 0.0
        %1908 = vmatprep.mubr.f32.mxu0 0.0
        %1909 = vmatmul.mubr.f32.gmra.mxu0 %v1608
        %v1910 = vpop.f32.mrf.mxu0
        %v1911 = vadd.f32 %v1599, %v1910
        %v1912 = vpop.f32.mrf.mxu0
        %v1913 = vadd.f32 %v1599, %v1912
        %1914 = vmatprep.mubr.f32.mxu0 0.0
        %1915 = vmatmul.mubr.f32.gmra.mxu0 %v1611
        %v1916 = vpop.f32.mrf.mxu0
        %v1917 = vadd.f32 %v1604, %v1916
        %v1918 = vpop.f32.mrf.mxu0
        %v1919 = vadd.f32 %v1604, %v1918
        %1920 = vdwg.mxu0
        %1921 = vmatprep.subr.mxu0 0.0
        %1922 = vmatpush1.msra.mxu0 0.0
        %1923 = vmatprep.subr.mxu0 0.0
        %1924 = vmatpush1.msra.mxu0 0.0
        %1925 = vmatprep.subr.mxu0 0.0
        %1926 = vmatpush1.msra.mxu0 0.0
        %1927 = vmatprep.subr.mxu0 0.0
        %1928 = vmatpush1.msra.mxu0 0.0
        %1929 = vmatprep.subr.mxu0 0.0
        %1930 = vmatpush1.msra.mxu0 0.0
        %1931 = vmatprep.subr.mxu0 0.0
        %1932 = vmatpush1.msra.mxu0 0.0
        %1933 = vmatprep.subr.mxu0 0.0
        %1934 = vmatpush1.msra.mxu0 0.0
        %1935 = vmatprep.subr.mxu0 0.0
        %1936 = vmatpush1.msra.mxu0 0.0
        %1937 = vmatprep.subr.mxu0 0.0
        %1938 = vmatpush1.msra.mxu0 0.0
        %1939 = vmatprep.subr.mxu0 0.0
        %1940 = vmatpush1.msra.mxu0 0.0
        %1941 = vmatprep.subr.mxu0 0.0
        %1942 = vmatpush1.msra.mxu0 0.0
        %1943 = vmatprep.subr.mxu0 0.0
        %1944 = vmatpush1.msra.mxu0 0.0
        %1945 = vmatprep.subr.mxu0 %v1585
        %1946 = vmatpush1.msra.mxu0 %v1584
        %1947 = vmatprep.subr.mxu0 %v1569
        %1948 = vmatpush1.msra.mxu0 %v1568
        %1949 = vmatprep.subr.mxu0 %v1553
        %1950 = vmatpush1.msra.mxu0 %v1552
        %1951 = vmatprep.subr.mxu0 %v1537
        %1952 = vmatpush1.msra.mxu0 %v1536
        %1953 = vmatprep.subr.mxu0 0.0
        %1954 = vmatpush2.msra.mxu0 0.0
        %1955 = vmatprep.subr.mxu0 0.0
        %1956 = vmatpush2.msra.mxu0 0.0
        %1957 = vmatprep.subr.mxu0 0.0
        %1958 = vmatpush2.msra.mxu0 0.0
        %1959 = vmatprep.subr.mxu0 0.0
        %1960 = vmatpush2.msra.mxu0 0.0
        %1961 = vmatprep.subr.mxu0 0.0
        %1962 = vmatpush2.msra.mxu0 0.0
        %1963 = vmatprep.subr.mxu0 0.0
        %1964 = vmatpush2.msra.mxu0 0.0
        %1965 = vmatprep.subr.mxu0 0.0
        %1966 = vmatpush2.msra.mxu0 0.0
        %1967 = vmatprep.subr.mxu0 0.0
        %1968 = vmatpush2.msra.mxu0 0.0
        %1969 = vmatprep.subr.mxu0 0.0
        %1970 = vmatpush2.msra.mxu0 0.0
        %1971 = vmatprep.subr.mxu0 0.0
        %1972 = vmatpush2.msra.mxu0 0.0
        %1973 = vmatprep.subr.mxu0 0.0
        %1974 = vmatpush2.msra.mxu0 0.0
        %1975 = vmatprep.subr.mxu0 0.0
        %1976 = vmatpush2.msra.mxu0 0.0
        %1977 = vmatprep.subr.mxu0 0.0
        %1978 = vmatpush2.msra.mxu0 0.0
        %1979 = vmatprep.subr.mxu0 0.0
        %1980 = vmatpush2.msra.mxu0 0.0
        %1981 = vmatprep.subr.mxu0 0.0
        %1982 = vmatpush2.msra.mxu0 0.0
        %1983 = vmatprep.subr.mxu0 0.0
        %1984 = vmatpush2.msra.mxu0 0.0
        %1985 = vmatprep.mubr.f32.mxu0 0.0
        %1986 = vmatmul.mubr.f32.gmra.mxu0 %v1608
        %v1987 = vpop.f32.mrf.mxu0
        %v1988 = vadd.f32 %v1599, %v1987
        %v1989 = vpop.f32.mrf.mxu0
        %v1990 = vadd.f32 %v1599, %v1989
        %1991 = vmatprep.mubr.f32.mxu0 0.0
        %1992 = vmatmul.mubr.f32.gmra.mxu0 %v1611
        %v1993 = vpop.f32.mrf.mxu0
        %v1994 = vadd.f32 %v1604, %v1993
        %v1995 = vpop.f32.mrf.mxu0
        %v1996 = vadd.f32 %v1604, %v1995
        %1997 = vdwg.mxu0
        %1998 = vmatprep.subr.mxu0 0.0
        %1999 = vmatpush1.msra.mxu0 0.0
        %2000 = vmatprep.subr.mxu0 0.0
        %2001 = vmatpush1.msra.mxu0 0.0
        %2002 = vmatprep.subr.mxu0 0.0
        %2003 = vmatpush1.msra.mxu0 0.0
        %2004 = vmatprep.subr.mxu0 0.0
        %2005 = vmatpush1.msra.mxu0 0.0
        %2006 = vmatprep.subr.mxu0 0.0
        %2007 = vmatpush1.msra.mxu0 0.0
        %2008 = vmatprep.subr.mxu0 0.0
        %2009 = vmatpush1.msra.mxu0 0.0
        %2010 = vmatprep.subr.mxu0 0.0
        %2011 = vmatpush1.msra.mxu0 0.0
        %2012 = vmatprep.subr.mxu0 0.0
        %2013 = vmatpush1.msra.mxu0 0.0
        %2014 = vmatprep.subr.mxu0 0.0
        %2015 = vmatpush1.msra.mxu0 0.0
        %2016 = vmatprep.subr.mxu0 0.0
        %2017 = vmatpush1.msra.mxu0 0.0
        %2018 = vmatprep.subr.mxu0 0.0
        %2019 = vmatpush1.msra.mxu0 0.0
        %2020 = vmatprep.subr.mxu0 0.0
        %2021 = vmatpush1.msra.mxu0 0.0
        %2022 = vmatprep.subr.mxu0 %v1587
        %2023 = vmatpush1.msra.mxu0 %v1586
        %2024 = vmatprep.subr.mxu0 %v1571
        %2025 = vmatpush1.msra.mxu0 %v1570
        %2026 = vmatprep.subr.mxu0 %v1555
        %2027 = vmatpush1.msra.mxu0 %v1554
        %2028 = vmatprep.subr.mxu0 %v1539
        %2029 = vmatpush1.msra.mxu0 %v1538
        %2030 = vmatprep.subr.mxu0 0.0
        %2031 = vmatpush2.msra.mxu0 0.0
        %2032 = vmatprep.subr.mxu0 0.0
        %2033 = vmatpush2.msra.mxu0 0.0
        %2034 = vmatprep.subr.mxu0 0.0
        %2035 = vmatpush2.msra.mxu0 0.0
        %2036 = vmatprep.subr.mxu0 0.0
        %2037 = vmatpush2.msra.mxu0 0.0
        %2038 = vmatprep.subr.mxu0 0.0
        %2039 = vmatpush2.msra.mxu0 0.0
        %2040 = vmatprep.subr.mxu0 0.0
        %2041 = vmatpush2.msra.mxu0 0.0
        %2042 = vmatprep.subr.mxu0 0.0
        %2043 = vmatpush2.msra.mxu0 0.0
        %2044 = vmatprep.subr.mxu0 0.0
        %2045 = vmatpush2.msra.mxu0 0.0
        %2046 = vmatprep.subr.mxu0 0.0
        %2047 = vmatpush2.msra.mxu0 0.0
        %2048 = vmatprep.subr.mxu0 0.0
        %2049 = vmatpush2.msra.mxu0 0.0
        %2050 = vmatprep.subr.mxu0 0.0
        %2051 = vmatpush2.msra.mxu0 0.0
        %2052 = vmatprep.subr.mxu0 0.0
        %2053 = vmatpush2.msra.mxu0 0.0
        %2054 = vmatprep.subr.mxu0 0.0
        %2055 = vmatpush2.msra.mxu0 0.0
        %2056 = vmatprep.subr.mxu0 0.0
        %2057 = vmatpush2.msra.mxu0 0.0
        %2058 = vmatprep.subr.mxu0 0.0
        %2059 = vmatpush2.msra.mxu0 0.0
        %2060 = vmatprep.subr.mxu0 0.0
        %2061 = vmatpush2.msra.mxu0 0.0
        %2062 = vmatprep.mubr.f32.mxu0 0.0
        %2063 = vmatmul.mubr.f32.gmra.mxu0 %v1608
        %v2064 = vpop.f32.mrf.mxu0
        %v2065 = vadd.f32 %v1599, %v2064
        %v2066 = vpop.f32.mrf.mxu0
        %v2067 = vadd.f32 %v1599, %v2066
        %2068 = vmatprep.mubr.f32.mxu0 0.0
        %2069 = vmatmul.mubr.f32.gmra.mxu0 %v1611
        %v2070 = vpop.f32.mrf.mxu0
        %v2071 = vadd.f32 %v1604, %v2070
        %v2072 = vpop.f32.mrf.mxu0
        %v2073 = vadd.f32 %v1604, %v2072
        %2074 = vdwg.mxu0
        %2075 = vmatprep.subr.mxu0 0.0
        %2076 = vmatpush1.msra.mxu0 0.0
        %2077 = vmatprep.subr.mxu0 0.0
        %2078 = vmatpush1.msra.mxu0 0.0
        %2079 = vmatprep.subr.mxu0 0.0
        %2080 = vmatpush1.msra.mxu0 0.0
        %2081 = vmatprep.subr.mxu0 0.0
        %2082 = vmatpush1.msra.mxu0 0.0
        %2083 = vmatprep.subr.mxu0 0.0
        %2084 = vmatpush1.msra.mxu0 0.0
        %2085 = vmatprep.subr.mxu0 0.0
        %2086 = vmatpush1.msra.mxu0 0.0
        %2087 = vmatprep.subr.mxu0 0.0
        %2088 = vmatpush1.msra.mxu0 0.0
        %2089 = vmatprep.subr.mxu0 0.0
        %2090 = vmatpush1.msra.mxu0 0.0
        %2091 = vmatprep.subr.mxu0 0.0
        %2092 = vmatpush1.msra.mxu0 0.0
        %2093 = vmatprep.subr.mxu0 0.0
        %2094 = vmatpush1.msra.mxu0 0.0
        %2095 = vmatprep.subr.mxu0 0.0
        %2096 = vmatpush1.msra.mxu0 0.0
        %2097 = vmatprep.subr.mxu0 0.0
        %2098 = vmatpush1.msra.mxu0 0.0
        %2099 = vmatprep.subr.mxu0 %v1589
        %2100 = vmatpush1.msra.mxu0 %v1588
        %2101 = vmatprep.subr.mxu0 %v1573
        %2102 = vmatpush1.msra.mxu0 %v1572
        %2103 = vmatprep.subr.mxu0 %v1557
        %2104 = vmatpush1.msra.mxu0 %v1556
        %2105 = vmatprep.subr.mxu0 %v1541
        %2106 = vmatpush1.msra.mxu0 %v1540
        %2107 = vmatprep.subr.mxu0 0.0
        %2108 = vmatpush2.msra.mxu0 0.0
        %2109 = vmatprep.subr.mxu0 0.0
        %2110 = vmatpush2.msra.mxu0 0.0
        %2111 = vmatprep.subr.mxu0 0.0
        %2112 = vmatpush2.msra.mxu0 0.0
        %2113 = vmatprep.subr.mxu0 0.0
        %2114 = vmatpush2.msra.mxu0 0.0
        %2115 = vmatprep.subr.mxu0 0.0
        %2116 = vmatpush2.msra.mxu0 0.0
        %2117 = vmatprep.subr.mxu0 0.0
        %2118 = vmatpush2.msra.mxu0 0.0
        %2119 = vmatprep.subr.mxu0 0.0
        %2120 = vmatpush2.msra.mxu0 0.0
        %2121 = vmatprep.subr.mxu0 0.0
        %2122 = vmatpush2.msra.mxu0 0.0
        %2123 = vmatprep.subr.mxu0 0.0
        %2124 = vmatpush2.msra.mxu0 0.0
        %2125 = vmatprep.subr.mxu0 0.0
        %2126 = vmatpush2.msra.mxu0 0.0
        %2127 = vmatprep.subr.mxu0 0.0
        %2128 = vmatpush2.msra.mxu0 0.0
        %2129 = vmatprep.subr.mxu0 0.0
        %2130 = vmatpush2.msra.mxu0 0.0
        %2131 = vmatprep.subr.mxu0 0.0
        %2132 = vmatpush2.msra.mxu0 0.0
        %2133 = vmatprep.subr.mxu0 0.0
        %2134 = vmatpush2.msra.mxu0 0.0
        %2135 = vmatprep.subr.mxu0 0.0
        %2136 = vmatpush2.msra.mxu0 0.0
        %2137 = vmatprep.subr.mxu0 0.0
        %2138 = vmatpush2.msra.mxu0 0.0
        %2139 = vmatprep.mubr.f32.mxu0 0.0
        %2140 = vmatmul.mubr.f32.gmra.mxu0 %v1608
        %v2141 = vpop.f32.mrf.mxu0
        %v2142 = vadd.f32 %v1599, %v2141
        %v2143 = vpop.f32.mrf.mxu0
        %v2144 = vadd.f32 %v1599, %v2143
        %2145 = vmatprep.mubr.f32.mxu0 0.0
        %2146 = vmatmul.mubr.f32.gmra.mxu0 %v1611
        %v2147 = vpop.f32.mrf.mxu0
        %v2148 = vadd.f32 %v1604, %v2147
        %v2149 = vpop.f32.mrf.mxu0
        %v2150 = vadd.f32 %v1604, %v2149
        %2151 = vdwg.mxu0
        %2152 = vmatprep.subr.mxu0 0.0
        %2153 = vmatpush1.msra.mxu0 0.0
        %2154 = vmatprep.subr.mxu0 0.0
        %2155 = vmatpush1.msra.mxu0 0.0
        %2156 = vmatprep.subr.mxu0 0.0
        %2157 = vmatpush1.msra.mxu0 0.0
        %2158 = vmatprep.subr.mxu0 0.0
        %2159 = vmatpush1.msra.mxu0 0.0
        %2160 = vmatprep.subr.mxu0 0.0
        %2161 = vmatpush1.msra.mxu0 0.0
        %2162 = vmatprep.subr.mxu0 0.0
        %2163 = vmatpush1.msra.mxu0 0.0
        %2164 = vmatprep.subr.mxu0 0.0
        %2165 = vmatpush1.msra.mxu0 0.0
        %2166 = vmatprep.subr.mxu0 0.0
        %2167 = vmatpush1.msra.mxu0 0.0
        %2168 = vmatprep.subr.mxu0 0.0
        %2169 = vmatpush1.msra.mxu0 0.0
        %2170 = vmatprep.subr.mxu0 0.0
        %2171 = vmatpush1.msra.mxu0 0.0
        %2172 = vmatprep.subr.mxu0 0.0
        %2173 = vmatpush1.msra.mxu0 0.0
        %2174 = vmatprep.subr.mxu0 0.0
        %2175 = vmatpush1.msra.mxu0 0.0
        %2176 = vmatprep.subr.mxu0 %v1591
        %2177 = vmatpush1.msra.mxu0 %v1590
        %2178 = vmatprep.subr.mxu0 %v1575
        %2179 = vmatpush1.msra.mxu0 %v1574
        %2180 = vmatprep.subr.mxu0 %v1559
        %2181 = vmatpush1.msra.mxu0 %v1558
        %2182 = vmatprep.subr.mxu0 %v1543
        %2183 = vmatpush1.msra.mxu0 %v1542
        %2184 = vmatprep.subr.mxu0 0.0
        %2185 = vmatpush2.msra.mxu0 0.0
        %2186 = vmatprep.subr.mxu0 0.0
        %2187 = vmatpush2.msra.mxu0 0.0
        %2188 = vmatprep.subr.mxu0 0.0
        %2189 = vmatpush2.msra.mxu0 0.0
        %2190 = vmatprep.subr.mxu0 0.0
        %2191 = vmatpush2.msra.mxu0 0.0
        %2192 = vmatprep.subr.mxu0 0.0
        %2193 = vmatpush2.msra.mxu0 0.0
        %2194 = vmatprep.subr.mxu0 0.0
        %2195 = vmatpush2.msra.mxu0 0.0
        %2196 = vmatprep.subr.mxu0 0.0
        %2197 = vmatpush2.msra.mxu0 0.0
        %2198 = vmatprep.subr.mxu0 0.0
        %2199 = vmatpush2.msra.mxu0 0.0
        %2200 = vmatprep.subr.mxu0 0.0
        %2201 = vmatpush2.msra.mxu0 0.0
        %2202 = vmatprep.subr.mxu0 0.0
        %2203 = vmatpush2.msra.mxu0 0.0
        %2204 = vmatprep.subr.mxu0 0.0
        %2205 = vmatpush2.msra.mxu0 0.0
        %2206 = vmatprep.subr.mxu0 0.0
        %2207 = vmatpush2.msra.mxu0 0.0
        %2208 = vmatprep.subr.mxu0 0.0
        %2209 = vmatpush2.msra.mxu0 0.0
        %2210 = vmatprep.subr.mxu0 0.0
        %2211 = vmatpush2.msra.mxu0 0.0
        %2212 = vmatprep.subr.mxu0 0.0
        %2213 = vmatpush2.msra.mxu0 0.0
        %2214 = vmatprep.subr.mxu0 0.0
        %2215 = vmatpush2.msra.mxu0 0.0
        %2216 = vmatprep.mubr.f32.mxu0 0.0
        %2217 = vmatmul.mubr.f32.gmra.mxu0 %v1608
        %v2218 = vpop.f32.mrf.mxu0
        %v2219 = vadd.f32 %v1599, %v2218
        %v2220 = vpop.f32.mrf.mxu0
        %v2221 = vadd.f32 %v1599, %v2220
        %2222 = vmatprep.mubr.f32.mxu0 0.0
        %2223 = vmatmul.mubr.f32.gmra.mxu0 %v1611
        %v2224 = vpop.f32.mrf.mxu0
        %v2225 = vadd.f32 %v1604, %v2224
        %v2226 = vpop.f32.mrf.mxu0
        %v2227 = vadd.f32 %v1604, %v2226
        %2228 = vdwg.mxu0
        %2229 = vst [vmem:[%s260] sm:$0xff] %v1680
        %2230 = vst [vmem:[%s260 + $0x8] sm:$0xff] %v1682
        %2231 = vst [vmem:[%s260 + $0x10] sm:$0xff] %v1757
        %2232 = vst [vmem:[%s260 + $0x18] sm:$0xff] %v1759
        %2233 = vst [vmem:[%s260 + $0x20] sm:$0xff] %v1834
        %2234 = vst [vmem:[%s260 + $0x28] sm:$0xff] %v1836
        %2235 = vst [vmem:[%s260 + $0x30] sm:$0xff] %v1911
        %2236 = vst [vmem:[%s260 + $0x38] sm:$0xff] %v1913
        %2237 = vst [vmem:[%s260 + $0x40] sm:$0xff] %v1988
        %2238 = vst [vmem:[%s260 + $0x48] sm:$0xff] %v1990
        %2239 = vst [vmem:[%s260 + $0x50] sm:$0xff] %v2065
        %2240 = vst [vmem:[%s260 + $0x58] sm:$0xff] %v2067
        %2241 = vst [vmem:[%s260 + $0x60] sm:$0xff] %v2142
        %2242 = vst [vmem:[%s260 + $0x68] sm:$0xff] %v2144
        %2243 = vst [vmem:[%s260 + $0x70] sm:$0xff] %v2219
        %2244 = vst [vmem:[%s260 + $0x78] sm:$0xff] %v2221
        %2245 = vst [vmem:[%s260 + $0x80] sm:$0xff] %v1686
        %2246 = vst [vmem:[%s260 + $0x88] sm:$0xff] %v1688
        %2247 = vst [vmem:[%s260 + $0x90] sm:$0xff] %v1763
        %2248 = vst [vmem:[%s260 + $0x98] sm:$0xff] %v1765
        %2249 = vst [vmem:[%s260 + $0xa0] sm:$0xff] %v1840
        %2250 = vst [vmem:[%s260 + $0xa8] sm:$0xff] %v1842
        %2251 = vst [vmem:[%s260 + $0xb0] sm:$0xff] %v1917
        %2252 = vst [vmem:[%s260 + $0xb8] sm:$0xff] %v1919
        %2253 = vst [vmem:[%s260 + $0xc0] sm:$0xff] %v1994
        %2254 = vst [vmem:[%s260 + $0xc8] sm:$0xff] %v1996
        %2255 = vst [vmem:[%s260 + $0xd0] sm:$0xff] %v2071
        %2256 = vst [vmem:[%s260 + $0xd8] sm:$0xff] %v2073
        %2257 = vst [vmem:[%s260 + $0xe0] sm:$0xff] %v2148
        %2258 = vst [vmem:[%s260 + $0xe8] sm:$0xff] %v2150
        %2259 = vst [vmem:[%s260 + $0xf0] sm:$0xff] %v2225
        %2260 = vst [vmem:[%s260 + $0xf8] sm:$0xff] %v2227
        %s2261 = sand.u32 %s156, 1
        %s2262 = scalar_lea.sflag [#allocation4], %s2261
        %s2263 = sand.u32 %s156, 1
        %s2264 = smul.addr %s2263, 256
        %s2265 = scalar_lea.vmem [#allocation5], %s2264
        // Predicated region
        $region45: #{tpu_custom_call.1} parent=39 // pred_check
          %p2266 = pneg %p166
        $region46: #{tpu_custom_call.1} parent=39 // pred_check_branch
          %2268 = sbr.rel (%p2266) target = $region48
        $region47: #{tpu_custom_call.1} parent=39 // pred_region
          %s2269 = smul.u32 16, %s27
          %s2271 = ssub.s32 4096, 4096
          %2272 = vsyncadd %s2262, %s2271
          %s2273 = smul.addr %s26, 128
          %s2274 = sadd.s32 %s2269, %s2273
          %s2275 = smul.addr %s2274, 128
          %s2276 = scalar_lea.hbm %s5, %s2275
          %s2277 = sshll.u32 %s2265, 4
          %s2278 = int_to_ptr.vmem [resolvable:$true] %s2277
          %2283 = dma.vmem_to_hbm [thread:$0]  %s2278, 4096, %s2276, %s2262, 2048, 8192, 128
        $region48: #{tpu_custom_call.1} parent=39 // pred_fallthru
          _
      $region40: #{tpu_custom_call.1} parent=5 // pred_fallthru
        _
      %p2284 = scmp.le.s32.totalorder 2, %s17
      // Predicated region
      $region49: #{tpu_custom_call.1} parent=5 // pred_check
        %p2285 = pneg %p2284
      $region50: #{tpu_custom_call.1} parent=5 // pred_check_branch
        %2287 = sbr.rel (%p2285) target = $region52
      $region51: #{tpu_custom_call.1} parent=5 // pred_region
        %s2288 = ssub.s32 %s17, 2
        // Predicated region
        $region53: #{tpu_custom_call.1} parent=51 // pred_check
          %p2289 = pneg %p172
        $region54: #{tpu_custom_call.1} parent=51 // pred_check_branch
          %2291 = sbr.rel (%p2289) target = $region56
        $region55: #{tpu_custom_call.1} parent=51 // pred_region
          %s2292 = sand.u32 %s157, 1
          %s2293 = scalar_lea.sflag [#allocation4], %s2292
          %s2294 = sand.u32 %s157, 1
          %s2295 = smul.addr %s2294, 256
          %s2296 = scalar_lea.vmem [#allocation5], %s2295
          %2297 = dma.done %s2293, 4096
        $region56: #{tpu_custom_call.1} parent=51 // pred_fallthru
          _
      $region52: #{tpu_custom_call.1} parent=5 // pred_fallthru
        _
    $region6: #{tpu_custom_call.1} parent=1 // loop_footer
      %s21 = sadd.s32 1, %s17
    $region7: #{tpu_custom_call.1} parent=1 // loop_footer_branch
      %16 = sbr.rel target = $region3
    $region8: #{tpu_custom_call.1} parent=1 // loop_exit
      _
    %2298 = vsyncpa [#allocation3], 1
    %s2299 = scalar_lea.sflag [#allocation3], 1
    %2300 = vsyncpa %s2299, 1
    %2301 = vsyncpa [#allocation4], 1
    %s2302 = scalar_lea.sflag [#allocation4], 1
    %2303 = vsyncpa %s2302, 1

</llo_original>
